<compile_context>
chip_gen: v7x
topology: tpu7x:2x2x1
jax: 0.10.0
libtpu: 0.0.40
codegen_flags: <defaults>
</compile_context>

<pallas_src>
import math
import functools

import jax
import jax.numpy as jnp
import numpy as np
from jax.experimental import pallas as pl
from jax.experimental.pallas import tpu as pltpu

TIME_EMBED_DIM = 16
SPACE_EMBED_DIM = 16
HIDDEN_SIZE = TIME_EMBED_DIM + SPACE_EMBED_DIM  # 32
NUM_LAYERS = 4


def _silu(z):
    # silu(z) = z * sigmoid(z) = 0.5*z*(1 + tanh(0.5*z))
    # -> a single EUP transcendental (tanh) per element instead of exp + div.
    zh = 0.5 * z
    return zh + zh * jnp.tanh(zh)


def _round_up(n, m):
    return pl.cdiv(n, m) * m


# ----------------------------------------------------------------------------
# Kernel: everything in (features, batch_tile) layout, batch on the lane axis.
#   x_ref : (xpad, TB)   padded x^T tile
#   t_ref : (1, TB)      time row
#   w_ref : (H + H*L + dpad, kc)  packed weights (rows: w_fuse | w_l[0..L) | w_out)
#   b_ref : (8 + H + H*L + dpad, 1) packed biases (rows: 2*pi*freq | b_fuse | b_l | b_out)
#   o_ref : (dpad, TB)   lane-dense output tile
# ----------------------------------------------------------------------------
def tinynet_kernel(x_ref, t_ref, w_ref, b_ref, o_ref, *,
                   num_layers, a_pad_rows, compute_dtype):
    half = TIME_EMBED_DIM // 2          # 8
    H = HIDDEN_SIZE                     # 32
    dpad = o_ref.shape[0]
    tb = t_ref.shape[-1]

    # Gaussian Fourier features of t (2*pi is already folded into the freqs).
    freq = b_ref[0:half, :]                                   # (8, 1)
    x_proj = freq * t_ref[...]                                # (8, TB)
    sin_p = jnp.sin(x_proj)
    cos_p = jnp.cos(x_proj)

    # Fused prologue input: [x_pad ; sin ; cos ; (zero pad)] -> (kc, TB).
    pieces = [x_ref[...], sin_p, cos_p]
    if a_pad_rows > 0:
        pieces.append(jnp.zeros((a_pad_rows, tb), jnp.float32))
    a = jnp.concatenate(pieces, axis=0).astype(compute_dtype)

    # linear_in + time_embed as one block-diagonal matmul, then SiLU.
    # Rows 0..15 of h are hx, rows 16..31 are ht -> h == concat([hx, ht]).
    z = (jnp.dot(w_ref[0:H, :].astype(compute_dtype), a,
                 preferred_element_type=jnp.float32)
         + b_ref[half:half + H, :])
    h = _silu(z.astype(compute_dtype))                        # (32, TB)

    # Hidden layers (tiny static unroll); weights sliced out of the pack with
    # static, sublane-aligned row slices.
    for l in range(num_layers):
        wr = H + H * l
        br = half + H + H * l
        z = (jnp.dot(w_ref[wr:wr + H, 0:H].astype(compute_dtype), h,
                     preferred_element_type=jnp.float32)
             + b_ref[br:br + H, :])
        h = _silu(z.astype(compute_dtype))                    # (32, TB)

    # Output projection: (dpad, 32) @ (32, TB) -> (dpad, TB), lane-dense store
    # (padded rows d..dpad are zero because w_out/b_out pad rows are zero).
    wr = H + H * num_layers
    br = half + H + H * num_layers
    o_ref[...] = (jnp.dot(w_ref[wr:wr + dpad, 0:H].astype(compute_dtype), h,
                          preferred_element_type=jnp.float32)
                  + b_ref[br:br + dpad, :]).astype(o_ref.dtype)


# ----------------------------------------------------------------------------
# Host-side weight preparation (done once): transpose to (out, in) layout and
# pack everything into one weight array + one bias array.
# ----------------------------------------------------------------------------
def prepare_params(p, d):
    f32 = jnp.float32
    half = TIME_EMBED_DIM // 2            # 8
    H = HIDDEN_SIZE                       # 32
    L = NUM_LAYERS
    xpad = int(_round_up(d, 8))           # padded feature rows for x
    dpad = int(_round_up(d, 8))           # padded output rows
    k_fuse = xpad + TIME_EMBED_DIM        # real prologue K
    kc = int(max(H, _round_up(k_fuse, 8)))  # packed column count

    # ---- weight pack: rows = [w_fuse(32) | w_l(32*L) | w_out(dpad)], cols = kc
    w_pack = jnp.zeros((H + H * L + dpad, kc), f32)
    w_in_T = p["w_in"].T.astype(f32)                            # (16, d)
    w_te_T = p["w_te"].T.astype(f32)                            # (16, 16)
    w_pack = w_pack.at[:SPACE_EMBED_DIM, :d].set(w_in_T)        # hx block
    w_pack = w_pack.at[SPACE_EMBED_DIM:H,
                       xpad:xpad + TIME_EMBED_DIM].set(w_te_T)  # ht block
    w_l_T = jnp.transpose(p["w_l"], (0, 2, 1)).astype(f32)      # (L, 32, 32) out,in
    w_pack = w_pack.at[H:H + L * H, :H].set(w_l_T.reshape(L * H, H))
    r0 = H + L * H
    w_pack = w_pack.at[r0:r0 + d, :H].set(p["w_out"].T.astype(f32))

    # ---- bias pack: rows = [2*pi*freq(8) | b_fuse(32) | b_l(32*L) | b_out(dpad)]
    b_pack = jnp.zeros((half + H + H * L + dpad, 1), f32)
    freq = (p["w_gfp"].reshape(-1) * (2.0 * math.pi)).astype(f32)
    b_pack = b_pack.at[:half, 0].set(freq)
    b_fuse = jnp.concatenate([p["b_in"].reshape(-1),
                              p["b_te"].reshape(-1)]).astype(f32)
    b_pack = b_pack.at[half:half + H, 0].set(b_fuse)
    b_pack = b_pack.at[half + H:half + H + L * H, 0].set(
        p["b_l"].reshape(-1).astype(f32))
    r0 = half + H + L * H
    b_pack = b_pack.at[r0:r0 + d, 0].set(p["b_out"].reshape(-1).astype(f32))

    return dict(d=int(d), xpad=xpad, dpad=dpad, k_fuse=int(k_fuse), kc=kc,
                w_pack=w_pack, b_pack=b_pack)


# ----------------------------------------------------------------------------
# Primary entry point: feature-major layout (x: (d, B), out: (d, B)).
# Upstream/downstream code that already lives in this layout avoids the two
# extra full-HBM transpose passes of the (B, d) convenience wrapper below.
# ----------------------------------------------------------------------------
def tinynet_forward_T(x_fm, t, kp, *, tile_b=8192, compute_dtype=jnp.float32):
    d, xpad, dpad, kc = kp["d"], kp["xpad"], kp["dpad"], kp["kc"]
    assert x_fm.shape[0] == d
    B = x_fm.shape[1]

    # Batch tiling: lane-aligned, capped for VMEM, and >= 2 grid steps when
    # the batch allows so "parallel" sharding can use both v7x TensorCores.
    Bp = int(_round_up(B, 128))
    tile = int(min(_round_up(int(tile_b), 128), 32768))
    tile = min(tile, Bp)
    if Bp // tile < 2 and Bp >= 256:
        tile = int(_round_up(Bp // 2, 128))
    Bp = int(_round_up(Bp, tile))
    grid = (Bp // tile,)

    # Zero-padded (features, batch) slabs (no-ops if caller data is aligned).
    xT = jnp.zeros((xpad, Bp), jnp.float32).at[:d, :B].set(
        x_fm.astype(jnp.float32))
    tr = jnp.zeros((1, Bp), jnp.float32).at[0, :B].set(t.astype(jnp.float32))

    kernel = functools.partial(
        tinynet_kernel,
        num_layers=NUM_LAYERS,
        a_pad_rows=kc - kp["k_fuse"],
        compute_dtype=compute_dtype)

    # Activations tiled along the batch (lane) axis; the two packed parameter
    # arrays use constant index_maps -> resident in VMEM across all steps.
    out_T = pl.pallas_call(
        kernel,
        out_shape=jax.ShapeDtypeStruct((dpad, Bp), jnp.float32),
        grid=grid,
        in_specs=[
            pl.BlockSpec((xpad, tile), lambda i: (0, i)),
            pl.BlockSpec((1, tile), lambda i: (0, i)),
            pl.BlockSpec(kp["w_pack"].shape, lambda i: (0, 0)),
            pl.BlockSpec(kp["b_pack"].shape, lambda i: (0, 0)),
        ],
        out_specs=pl.BlockSpec((dpad, tile), lambda i: (0, i)),
        compiler_params=pltpu.CompilerParams(
            dimension_semantics=("parallel",),
            vmem_limit_bytes=32 * 1024 * 1024),
    )(xT, tr, kp["w_pack"], kp["b_pack"])

    return out_T[:d, :B]


def tinynet_forward(x, t, kp, **kw):
    # Convenience (B, d) interface matching the PyTorch module. The two
    # transposes below are extra full HBM passes; prefer tinynet_forward_T
    # with feature-major data end-to-end for best wall-clock at large B.
    return tinynet_forward_T(x.T, t, kp, **kw).T


# ----------------------------------------------------------------------------
# Deterministic synthetic parameters (math layout: weights stored (in, out))
# and a pure-JAX reference matching the PyTorch forward.
# ----------------------------------------------------------------------------
def init_params(key, d):
    ks = jax.random.split(key, 8)
    f32 = jnp.float32

    def lin(kw, kb, n_in, n_out):
        bound = 1.0 / math.sqrt(n_in)
        w = jax.random.uniform(kw, (n_in, n_out), f32, -bound, bound)
        b = jax.random.uniform(kb, (1, n_out), f32, -bound, bound)
        return w, b

    w_gfp = jax.random.normal(ks[0], (1, TIME_EMBED_DIM // 2), f32) * 30.0
    w_te, b_te = lin(ks[1], ks[2], TIME_EMBED_DIM, TIME_EMBED_DIM)
    w_in, b_in = lin(ks[3], ks[4], d, SPACE_EMBED_DIM)

    w_ls, b_ls = [], []
    kl = jax.random.split(ks[5], 2 * NUM_LAYERS)
    for l in range(NUM_LAYERS):
        w, b = lin(kl[2 * l], kl[2 * l + 1], HIDDEN_SIZE, HIDDEN_SIZE)
        w_ls.append(w)
        b_ls.append(b)
    w_l = jnp.stack(w_ls)          # (L, 32, 32)
    b_l = jnp.stack(b_ls)          # (L, 1, 32)

    w_out, b_out = lin(ks[6], ks[7], HIDDEN_SIZE, d)

    return dict(w_gfp=w_gfp, w_te=w_te, b_te=b_te, w_in=w_in, b_in=b_in,
                w_l=w_l, b_l=b_l, w_out=w_out, b_out=b_out)


def tinynet_reference(x, t, p):
    def silu(z):
        return z * jax.nn.sigmoid(z)
    x_proj = t[:, None] * p["w_gfp"] * (2.0 * math.pi)
    tf = jnp.concatenate([jnp.sin(x_proj), jnp.cos(x_proj)], axis=-1)
    ht = silu(tf @ p["w_te"] + p["b_te"])
    hx = silu(x @ p["w_in"] + p["b_in"])
    h = jnp.concatenate([hx, ht], axis=-1)
    for l in range(NUM_LAYERS):
        h = silu(h @ p["w_l"][l] + p["b_l"][l])
    return h @ p["w_out"] + p["b_out"]


if __name__ == "__main__":
    d = 4
    B = 512            # small, but yields 2 lane-dense batch tiles (grid >= 2)

    key = jax.random.PRNGKey(0)
    kx, kt, kparams_key = jax.random.split(key, 3)

    x = jax.random.normal(kx, (B, d), jnp.float32)
    t = jax.random.uniform(kt, (B,), jnp.float32)
    params = init_params(kparams_key, d)
    kernel_params = prepare_params(params, d)

    # f32 everywhere for exactness vs. the reference; on v6e/v7x pass
    # compute_dtype=jnp.bfloat16 for ~2x on the EUP-bound inner loop
    # (re-validate with rtol ~1e-2..1e-3 in that case).
    out = tinynet_forward(x, t, kernel_params)
    jax.block_until_ready(out)

    ref = tinynet_reference(x, t, params)
    np.testing.assert_allclose(np.asarray(out), np.asarray(ref),
                               rtol=5e-5, atol=5e-5)
    print("KERNEL_OK")
</pallas_src>

<mosaic_0001>
module attributes {stable_mosaic.version = 11 : i64} {
  func.func @tinynet_kernel(%arg0: i32, %arg1: memref<8x256xf32, #tpu.memory_space<vmem>>, %arg2: memref<1x256xf32, #tpu.memory_space<vmem>>, %arg3: memref<168x32xf32, #tpu.memory_space<vmem>>, %arg4: memref<176x1xf32, #tpu.memory_space<vmem>>, %arg5: memref<8x256xf32, #tpu.memory_space<vmem>>) attributes {dimension_semantics = [#tpu.dimension_semantics<parallel>], iteration_bounds = array<i64: 2>, scalar_prefetch = 0 : i64, scratch_operands = 0 : i64, tpu.core_type = #tpu.core_type<tc>, window_params = [{transform_indices = @transform_0, window_bounds = array<i64: 8, 256>}, {transform_indices = @transform_1, window_bounds = array<i64: 1, 256>}, {pipeline_mode = #tpu.pipeline_mode<synchronous>, transform_indices = @transform_2, window_bounds = array<i64: 168, 32>}, {pipeline_mode = #tpu.pipeline_mode<synchronous>, transform_indices = @transform_3, window_bounds = array<i64: 176, 1>}, {transform_indices = @transform_4, window_bounds = array<i64: 8, 256>}]} {
    %c0 = arith.constant 0 : index
    %c0_0 = arith.constant 0 : index
    %0 = vector.load %arg4[%c0, %c0_0] : memref<176x1xf32, #tpu.memory_space<vmem>>, vector<8x1xf32>
    %c0_1 = arith.constant 0 : index
    %c0_2 = arith.constant 0 : index
    %1 = vector.load %arg2[%c0_1, %c0_2] : memref<1x256xf32, #tpu.memory_space<vmem>>, vector<1x256xf32>
    %2 = vector.broadcast %0 : vector<8x1xf32> to vector<8x256xf32>
    %3 = vector.broadcast %1 : vector<1x256xf32> to vector<8x256xf32>
    %4 = arith.mulf %2, %3 : vector<8x256xf32>
    %5 = math.sin %4 : vector<8x256xf32>
    %6 = math.cos %4 : vector<8x256xf32>
    %c0_3 = arith.constant 0 : index
    %c0_4 = arith.constant 0 : index
    %7 = vector.load %arg1[%c0_3, %c0_4] : memref<8x256xf32, #tpu.memory_space<vmem>>, vector<8x256xf32>
    %cst = arith.constant 0.000000e+00 : f32
    %8 = vector.broadcast %cst : f32 to vector<8x256xf32>
    %9 = tpu.concatenate %7, %5, %6, %8 in 0 : vector<8x256xf32>, vector<8x256xf32>, vector<8x256xf32>, vector<8x256xf32> -> vector<32x256xf32>
    %c0_5 = arith.constant 0 : index
    %c0_6 = arith.constant 0 : index
    %10 = vector.load %arg3[%c0_5, %c0_6] : memref<168x32xf32, #tpu.memory_space<vmem>>, vector<32x32xf32>
    %cst_7 = arith.constant dense<0.000000e+00> : vector<32x256xf32>
    %11 = tpu.matmul %10, %9, %cst_7 {dimension_numbers = #tpu.dot_dimension_numbers<[1], [0], [0], [1], [0, 0, 1, 1], [], []>} : vector<32x32xf32>, vector<32x256xf32>, vector<32x256xf32> -> vector<32x256xf32>
    %c8 = arith.constant 8 : index
    %c0_8 = arith.constant 0 : index
    %12 = vector.load %arg4[%c8, %c0_8] : memref<176x1xf32, #tpu.memory_space<vmem>>, vector<32x1xf32>
    %13 = vector.broadcast %12 : vector<32x1xf32> to vector<32x256xf32>
    %14 = arith.addf %11, %13 : vector<32x256xf32>
    %cst_9 = arith.constant 5.000000e-01 : f32
    %15 = vector.broadcast %cst_9 : f32 to vector<32x256xf32>
    %16 = arith.mulf %15, %14 : vector<32x256xf32>
    %17 = math.tanh %16 : vector<32x256xf32>
    %18 = arith.mulf %16, %17 : vector<32x256xf32>
    %19 = arith.addf %16, %18 : vector<32x256xf32>
    %c32 = arith.constant 32 : index
    %c0_10 = arith.constant 0 : index
    %20 = vector.load %arg3[%c32, %c0_10] : memref<168x32xf32, #tpu.memory_space<vmem>>, vector<32x32xf32>
    %cst_11 = arith.constant dense<0.000000e+00> : vector<32x256xf32>
    %21 = tpu.matmul %20, %19, %cst_11 {dimension_numbers = #tpu.dot_dimension_numbers<[1], [0], [0], [1], [0, 0, 1, 1], [], []>} : vector<32x32xf32>, vector<32x256xf32>, vector<32x256xf32> -> vector<32x256xf32>
    %c40 = arith.constant 40 : index
    %c0_12 = arith.constant 0 : index
    %22 = vector.load %arg4[%c40, %c0_12] : memref<176x1xf32, #tpu.memory_space<vmem>>, vector<32x1xf32>
    %23 = vector.broadcast %22 : vector<32x1xf32> to vector<32x256xf32>
    %24 = arith.addf %21, %23 : vector<32x256xf32>
    %cst_13 = arith.constant 5.000000e-01 : f32
    %25 = vector.broadcast %cst_13 : f32 to vector<32x256xf32>
    %26 = arith.mulf %25, %24 : vector<32x256xf32>
    %27 = math.tanh %26 : vector<32x256xf32>
    %28 = arith.mulf %26, %27 : vector<32x256xf32>
    %29 = arith.addf %26, %28 : vector<32x256xf32>
    %c64 = arith.constant 64 : index
    %c0_14 = arith.constant 0 : index
    %30 = vector.load %arg3[%c64, %c0_14] : memref<168x32xf32, #tpu.memory_space<vmem>>, vector<32x32xf32>
    %cst_15 = arith.constant dense<0.000000e+00> : vector<32x256xf32>
    %31 = tpu.matmul %30, %29, %cst_15 {dimension_numbers = #tpu.dot_dimension_numbers<[1], [0], [0], [1], [0, 0, 1, 1], [], []>} : vector<32x32xf32>, vector<32x256xf32>, vector<32x256xf32> -> vector<32x256xf32>
    %c72 = arith.constant 72 : index
    %c0_16 = arith.constant 0 : index
    %32 = vector.load %arg4[%c72, %c0_16] : memref<176x1xf32, #tpu.memory_space<vmem>>, vector<32x1xf32>
    %33 = vector.broadcast %32 : vector<32x1xf32> to vector<32x256xf32>
    %34 = arith.addf %31, %33 : vector<32x256xf32>
    %cst_17 = arith.constant 5.000000e-01 : f32
    %35 = vector.broadcast %cst_17 : f32 to vector<32x256xf32>
    %36 = arith.mulf %35, %34 : vector<32x256xf32>
    %37 = math.tanh %36 : vector<32x256xf32>
    %38 = arith.mulf %36, %37 : vector<32x256xf32>
    %39 = arith.addf %36, %38 : vector<32x256xf32>
    %c96 = arith.constant 96 : index
    %c0_18 = arith.constant 0 : index
    %40 = vector.load %arg3[%c96, %c0_18] : memref<168x32xf32, #tpu.memory_space<vmem>>, vector<32x32xf32>
    %cst_19 = arith.constant dense<0.000000e+00> : vector<32x256xf32>
    %41 = tpu.matmul %40, %39, %cst_19 {dimension_numbers = #tpu.dot_dimension_numbers<[1], [0], [0], [1], [0, 0, 1, 1], [], []>} : vector<32x32xf32>, vector<32x256xf32>, vector<32x256xf32> -> vector<32x256xf32>
    %c104 = arith.constant 104 : index
    %c0_20 = arith.constant 0 : index
    %42 = vector.load %arg4[%c104, %c0_20] : memref<176x1xf32, #tpu.memory_space<vmem>>, vector<32x1xf32>
    %43 = vector.broadcast %42 : vector<32x1xf32> to vector<32x256xf32>
    %44 = arith.addf %41, %43 : vector<32x256xf32>
    %cst_21 = arith.constant 5.000000e-01 : f32
    %45 = vector.broadcast %cst_21 : f32 to vector<32x256xf32>
    %46 = arith.mulf %45, %44 : vector<32x256xf32>
    %47 = math.tanh %46 : vector<32x256xf32>
    %48 = arith.mulf %46, %47 : vector<32x256xf32>
    %49 = arith.addf %46, %48 : vector<32x256xf32>
    %c128 = arith.constant 128 : index
    %c0_22 = arith.constant 0 : index
    %50 = vector.load %arg3[%c128, %c0_22] : memref<168x32xf32, #tpu.memory_space<vmem>>, vector<32x32xf32>
    %cst_23 = arith.constant dense<0.000000e+00> : vector<32x256xf32>
    %51 = tpu.matmul %50, %49, %cst_23 {dimension_numbers = #tpu.dot_dimension_numbers<[1], [0], [0], [1], [0, 0, 1, 1], [], []>} : vector<32x32xf32>, vector<32x256xf32>, vector<32x256xf32> -> vector<32x256xf32>
    %c136 = arith.constant 136 : index
    %c0_24 = arith.constant 0 : index
    %52 = vector.load %arg4[%c136, %c0_24] : memref<176x1xf32, #tpu.memory_space<vmem>>, vector<32x1xf32>
    %53 = vector.broadcast %52 : vector<32x1xf32> to vector<32x256xf32>
    %54 = arith.addf %51, %53 : vector<32x256xf32>
    %cst_25 = arith.constant 5.000000e-01 : f32
    %55 = vector.broadcast %cst_25 : f32 to vector<32x256xf32>
    %56 = arith.mulf %55, %54 : vector<32x256xf32>
    %57 = math.tanh %56 : vector<32x256xf32>
    %58 = arith.mulf %56, %57 : vector<32x256xf32>
    %59 = arith.addf %56, %58 : vector<32x256xf32>
    %c160 = arith.constant 160 : index
    %c0_26 = arith.constant 0 : index
    %60 = vector.load %arg3[%c160, %c0_26] : memref<168x32xf32, #tpu.memory_space<vmem>>, vector<8x32xf32>
    %cst_27 = arith.constant dense<0.000000e+00> : vector<8x256xf32>
    %61 = tpu.matmul %60, %59, %cst_27 {dimension_numbers = #tpu.dot_dimension_numbers<[1], [0], [0], [1], [0, 0, 1, 1], [], []>} : vector<8x32xf32>, vector<32x256xf32>, vector<8x256xf32> -> vector<8x256xf32>
    %c168 = arith.constant 168 : index
    %c0_28 = arith.constant 0 : index
    %62 = vector.load %arg4[%c168, %c0_28] : memref<176x1xf32, #tpu.memory_space<vmem>>, vector<8x1xf32>
    %63 = vector.broadcast %62 : vector<8x1xf32> to vector<8x256xf32>
    %64 = arith.addf %61, %63 : vector<8x256xf32>
    %c0_29 = arith.constant 0 : index
    %c0_30 = arith.constant 0 : index
    %65 = vector.load %arg5[%c0_29, %c0_30] : memref<8x256xf32, #tpu.memory_space<vmem>>, vector<8x256xf32>
    tpu.vector_store %arg5[%c0_29, %c0_30], %64 {strides = array<i32>} : memref<8x256xf32, #tpu.memory_space<vmem>>, vector<8x256xf32>,
    return
  }
  func.func @transform_0(%arg0: i32) -> (i32, i32) {
    %c0_i32 = arith.constant 0 : i32
    %c0_i32_0 = arith.constant 0 : i32
    return %c0_i32, %arg0 : i32, i32
  }
  func.func @transform_1(%arg0: i32) -> (i32, i32) {
    %c0_i32 = arith.constant 0 : i32
    %c0_i32_0 = arith.constant 0 : i32
    return %c0_i32, %arg0 : i32, i32
  }
  func.func @transform_2(%arg0: i32) -> (i32, i32) {
    %c0_i32 = arith.constant 0 : i32
    %c0_i32_0 = arith.constant 0 : i32
    %c0_i32_1 = arith.constant 0 : i32
    return %c0_i32, %c0_i32_0 : i32, i32
  }
  func.func @transform_3(%arg0: i32) -> (i32, i32) {
    %c0_i32 = arith.constant 0 : i32
    %c0_i32_0 = arith.constant 0 : i32
    %c0_i32_1 = arith.constant 0 : i32
    return %c0_i32, %c0_i32_0 : i32, i32
  }
  func.func @transform_4(%arg0: i32) -> (i32, i32) {
    %c0_i32 = arith.constant 0 : i32
    %c0_i32_0 = arith.constant 0 : i32
    return %c0_i32, %arg0 : i32, i32
  }
}

</mosaic_0001>

<llo_original>
// kernel: tpu_custom_call.1
$region0: #{tpu_custom_call.1}
  #allocation0 [shape = 'u32[]', space=smem, size = 0x4, offset = 0x4, fixed_abs, tag = 'smem constant byte address 0x4 - core index']
  #allocation1 [shape = 'u32[144,128]{1,0:T(1,128)}', space=vmem, size = 0x12000, scoped, tag = 'internal scratch']
  %s0 = inlined_call_operand.vmem [shape: f32[8,512], index: 0, kind: input, shape index: {}]
  %s1 = inlined_call_operand.vmem [shape: f32[1,512], index: 1, kind: input, shape index: {}]
  %s2 = inlined_call_operand.vmem [shape: f32[168,32], index: 2, kind: input, shape index: {}]
  %s3 = inlined_call_operand.vmem [shape: f32[176,1], index: 3, kind: input, shape index: {}]
  %s4 = inlined_call_operand.hbm [shape: f32[8,512], index: 4, kind: output, shape index: {}]
  %s5 = sld [smem:[#allocation0]]
  $region49: #{tpu_custom_call.1} parent=0
    _
  %s7 = ssub.s32 1, %s5
  %s8 = scalar_select 0, %s7, %s5
  $region1: #{tpu_custom_call.1} parent=0
    #allocation2 [shape = 'u8[16384]{0}', space=vmem, size = 0x4000, scoped, tag = 'output window, operand 0']
    #allocation3 [shape = 's32[2]{0}', space=sflag, size = 0x8, scoped, tag = 'scoped memory for tpu_custom_call.1']
    %9 = vsyncpa [#allocation3], 0
    %s10 = scalar_lea.sflag [#allocation3], 1
    %11 = vsyncpa %s10, 0
    loop: start=0, step=1, limit=4
    $region2: #{tpu_custom_call.1} parent=1 // loop_pre_header
      _
    $region3: #{tpu_custom_call.1} parent=1 // loop_header
      %s13 = sphi 0, %s17
      %p14 = scmp.ge.s32.totalorder %s13, 4
      %s23 = sphi 0, %s25
      %s26 = sphi 0, %s23
      %s27 = sphi 0, %s26
      %s43 = sphi 0, %s27
      %s49 = sphi 0, %s51
      %s52 = sphi 0, %s49
      %s53 = sphi 0, %s52
      %s69 = sphi 0, %s53
      %s73 = sphi 0, %s73
      %s75 = sphi 0, %s73
      %s76 = sphi 0, %s75
      %s90 = sphi 0, %s76
      %s94 = sphi 0, %s94
      %s96 = sphi 0, %s94
      %s97 = sphi 0, %s96
      %s111 = sphi 0, %s97
      %s117 = sphi 0, %s119
      %s120 = sphi 0, %s117
      %s121 = sphi 0, %s120
      %s137 = sphi 0, %s121
    $region4: #{tpu_custom_call.1} parent=1 // loop_header_branch
      %16 = sbr.rel (%p14) target = $region8
    $region5: #{tpu_custom_call.1} parent=1 // loop_body
      %s18 = ssub.s32 %s13, 1
      %s19 = ssub.s32 %s13, 2
      %s20 = sadd.s32 %s13, 1
      %s21 = ssub.s32 %s13, %s20
      %p22 = scmp.eq.s32.totalorder %s21, 0
      %s24 = sadd.s32 %s23, 1
      %s25 = scalar_select %p22, %s23, %s24
      %p28 = pneg %p22
      %p29 = scmp.eq.s32.totalorder %s13, 1
      %p30 = por %p28, %p29
      %p31 = scmp.ne.s32.totalorder %s23, %s26
      %p32 = scmp.eq.s32.totalorder %s13, 0
      %p33 = por %p31, %p32
      %p34 = scmp.ne.s32.totalorder %s23, %s26
      %p35 = scmp.eq.s32.totalorder %s18, 1
      %p36 = por %p34, %p35
      %p37 = scmp.ne.s32.totalorder %s26, %s27
      %p38 = scmp.eq.s32.totalorder %s18, 0
      %p39 = por %p37, %p38
      %p40 = scmp.ne.s32.totalorder %s26, %s27
      %p41 = scmp.eq.s32.totalorder %s19, 1
      %p42 = por %p40, %p41
      %p44 = scmp.ne.s32.totalorder %s27, %s43
      %p45 = scmp.eq.s32.totalorder %s19, 0
      %p46 = por %p44, %p45
      %s47 = ssub.s32 %s13, %s20
      %p48 = scmp.eq.s32.totalorder %s47, 0
      %s50 = sadd.s32 %s49, 1
      %s51 = scalar_select %p48, %s49, %s50
      %p54 = pneg %p48
      %p55 = scmp.eq.s32.totalorder %s13, 1
      %p56 = por %p54, %p55
      %p57 = scmp.ne.s32.totalorder %s49, %s52
      %p58 = scmp.eq.s32.totalorder %s13, 0
      %p59 = por %p57, %p58
      %p60 = scmp.ne.s32.totalorder %s49, %s52
      %p61 = scmp.eq.s32.totalorder %s18, 1
      %p62 = por %p60, %p61
      %p63 = scmp.ne.s32.totalorder %s52, %s53
      %p64 = scmp.eq.s32.totalorder %s18, 0
      %p65 = por %p63, %p64
      %p66 = scmp.ne.s32.totalorder %s52, %s53
      %p67 = scmp.eq.s32.totalorder %s19, 1
      %p68 = por %p66, %p67
      %p70 = scmp.ne.s32.totalorder %s53, %s69
      %p71 = scmp.eq.s32.totalorder %s19, 0
      %p72 = por %p70, %p71
      %s74 = sadd.s32 %s73, 1
      %p77 = scmp.eq.s32.totalorder %s13, 1
      %p78 = scmp.ne.s32.totalorder %s73, %s75
      %p79 = scmp.eq.s32.totalorder %s13, 0
      %p80 = por %p78, %p79
      %p81 = scmp.ne.s32.totalorder %s73, %s75
      %p82 = scmp.eq.s32.totalorder %s18, 1
      %p83 = por %p81, %p82
      %p84 = scmp.ne.s32.totalorder %s75, %s76
      %p85 = scmp.eq.s32.totalorder %s18, 0
      %p86 = por %p84, %p85
      %p87 = scmp.ne.s32.totalorder %s75, %s76
      %p88 = scmp.eq.s32.totalorder %s19, 1
      %p89 = por %p87, %p88
      %p91 = scmp.ne.s32.totalorder %s76, %s90
      %p92 = scmp.eq.s32.totalorder %s19, 0
      %p93 = por %p91, %p92
      %s95 = sadd.s32 %s94, 1
      %p98 = scmp.eq.s32.totalorder %s13, 1
      %p99 = scmp.ne.s32.totalorder %s94, %s96
      %p100 = scmp.eq.s32.totalorder %s13, 0
      %p101 = por %p99, %p100
      %p102 = scmp.ne.s32.totalorder %s94, %s96
      %p103 = scmp.eq.s32.totalorder %s18, 1
      %p104 = por %p102, %p103
      %p105 = scmp.ne.s32.totalorder %s96, %s97
      %p106 = scmp.eq.s32.totalorder %s18, 0
      %p107 = por %p105, %p106
      %p108 = scmp.ne.s32.totalorder %s96, %s97
      %p109 = scmp.eq.s32.totalorder %s19, 1
      %p110 = por %p108, %p109
      %p112 = scmp.ne.s32.totalorder %s97, %s111
      %p113 = scmp.eq.s32.totalorder %s19, 0
      %p114 = por %p112, %p113
      %s115 = ssub.s32 %s13, %s20
      %p116 = scmp.eq.s32.totalorder %s115, 0
      %s118 = sadd.s32 %s117, 1
      %s119 = scalar_select %p116, %s117, %s118
      %p122 = pneg %p116
      %p123 = scmp.eq.s32.totalorder %s13, 1
      %p124 = por %p122, %p123
      %p125 = scmp.ne.s32.totalorder %s117, %s120
      %p126 = scmp.eq.s32.totalorder %s13, 0
      %p127 = por %p125, %p126
      %p128 = scmp.ne.s32.totalorder %s117, %s120
      %p129 = scmp.eq.s32.totalorder %s18, 1
      %p130 = por %p128, %p129
      %p131 = scmp.ne.s32.totalorder %s120, %s121
      %p132 = scmp.eq.s32.totalorder %s18, 0
      %p133 = por %p131, %p132
      %p134 = scmp.ne.s32.totalorder %s120, %s121
      %p135 = scmp.eq.s32.totalorder %s19, 1
      %p136 = por %p134, %p135
      %p138 = scmp.ne.s32.totalorder %s121, %s137
      %p139 = scmp.eq.s32.totalorder %s19, 0
      %p140 = por %p138, %p139
      %p141 = scmp.le.s32.totalorder 1, %s13
      %p142 = scmp.lt.s32.totalorder %s13, 3
      %p143 = pnand %p141, %p142
      %p144 = pneg %p143
      // Predicated region
      $region9: #{tpu_custom_call.1} parent=5 // pred_check
        _
      $region10: #{tpu_custom_call.1} parent=5 // pred_check_branch
        %146 = sbr.rel (%p143) target = $region12
      $region11: #{tpu_custom_call.1} parent=5 // pred_region
        %s147 = ssub.s32 %s13, 1
        // Predicated region
        $region13: #{tpu_custom_call.1} parent=11 // pred_check
          %p148 = pneg %p86
        $region14: #{tpu_custom_call.1} parent=11 // pred_check_branch
          %150 = sbr.rel (%p148) target = $region16
        $region15: #{tpu_custom_call.1} parent=11 // pred_region
          _
        $region16: #{tpu_custom_call.1} parent=11 // pred_fallthru
          _
        // Predicated region
        $region17: #{tpu_custom_call.1} parent=11 // pred_check
          %p151 = pneg %p107
        $region18: #{tpu_custom_call.1} parent=11 // pred_check_branch
          %153 = sbr.rel (%p151) target = $region20
        $region19: #{tpu_custom_call.1} parent=11 // pred_region
          _
        $region20: #{tpu_custom_call.1} parent=11 // pred_fallthru
          _
      $region12: #{tpu_custom_call.1} parent=5 // pred_fallthru
        _
      %p154 = scmp.lt.s32.totalorder %s13, 2
      // Predicated region
      $region21: #{tpu_custom_call.1} parent=5 // pred_check
        %p155 = pneg %p154
      $region22: #{tpu_custom_call.1} parent=5 // pred_check_branch
        %157 = sbr.rel (%p155) target = $region24
      $region23: #{tpu_custom_call.1} parent=5 // pred_region
        // Predicated region
        $region25: #{tpu_custom_call.1} parent=23 // pred_check
          %p158 = pneg %p33
        $region26: #{tpu_custom_call.1} parent=23 // pred_check_branch
          %160 = sbr.rel (%p158) target = $region28
        $region27: #{tpu_custom_call.1} parent=23 // pred_region
          %s161 = smul.u32 2, %s13
          %p162 = scmp.lt.s32.totalorder %s161, 3
          %s163 = scalar_select %p162, %s161, 3
          %s164 = smul.addr %s163, 8
          %s165 = scalar_lea.vmem %s0, %s164
          %s166 = smul.u32 2, %s13
        $region28: #{tpu_custom_call.1} parent=23 // pred_fallthru
          _
        // Predicated region
        $region29: #{tpu_custom_call.1} parent=23 // pred_check
          %p167 = pneg %p59
        $region30: #{tpu_custom_call.1} parent=23 // pred_check_branch
          %169 = sbr.rel (%p167) target = $region32
        $region31: #{tpu_custom_call.1} parent=23 // pred_region
          %s170 = smul.u32 2, %s13
          %p171 = scmp.lt.s32.totalorder %s170, 3
          %s172 = scalar_select %p171, %s170, 3
          %s173 = scalar_lea.vmem %s1, %s172
          %s174 = smul.u32 2, %s13
        $region32: #{tpu_custom_call.1} parent=23 // pred_fallthru
          _
      $region24: #{tpu_custom_call.1} parent=5 // pred_fallthru
        _
      %p175 = scmp.le.s32.totalorder 1, %s13
      %p176 = scmp.lt.s32.totalorder %s13, 3
      %p177 = pnand %p175, %p176
      %p178 = pneg %p177
      // Predicated region
      $region33: #{tpu_custom_call.1} parent=5 // pred_check
        _
      $region34: #{tpu_custom_call.1} parent=5 // pred_check_branch
        %180 = sbr.rel (%p177) target = $region36
      $region35: #{tpu_custom_call.1} parent=5 // pred_region
        %s181 = ssub.s32 %s13, 1
        %s182 = smul.u32 2, %s18
        %p183 = scmp.lt.s32.totalorder %s182, 3
        %s184 = scalar_select %p183, %s182, 3
        %s185 = smul.addr %s184, 8
        %s186 = scalar_lea.vmem %s0, %s185
        %p187 = pneg %p39
        %p188 = pneg %p36
        %s189 = smul.u32 2, %s18
        %p190 = scmp.lt.s32.totalorder %s189, 3
        %s191 = scalar_select %p190, %s189, 3
        %s192 = scalar_lea.vmem %s1, %s191
        %p193 = pneg %p65
        %p194 = pneg %p62
        %p195 = pneg %p86
        %p196 = pneg %p83
        %p197 = pneg %p107
        %p198 = pneg %p104
        %p199 = pneg %p133
        %p200 = pneg %p130
        %s201 = sand.u32 %s120, 1
        %s202 = scalar_lea.sflag [#allocation3], %s201
        %s203 = sand.u32 %s120, 1
        %s204 = smul.addr %s203, 16
        %s205 = scalar_lea.vmem [#allocation2], %s204
        %s206 = smul.u32 2, %s18
        %p207 = scmp.lt.s32.totalorder %s206, 3
        %s208 = scalar_select %p207, %s206, 3
        %s209 = smul.addr %s208, 8
        %s210 = scalar_lea.vmem %s0, %s209
        %s211 = smul.u32 2, %s18
        %s212 = smul.u32 2, %s18
        %p213 = scmp.lt.s32.totalorder %s212, 3
        %s214 = scalar_select %p213, %s212, 3
        %s215 = scalar_lea.vmem %s1, %s214
        %s216 = smul.u32 2, %s18
        %s217 = smul.u32 2, %s18
        %v218 = vld [vmem:[%s3] sm:$0xff]
        %v219 = vld [vmem:[%s215] sm:$0x3]
        %221 = vset.pattern.permute.xlu0 0
        %222 = vperm.xlu0 %221, %v218
        %v223 = vpop.permute.xlu0 %222
        %v226 = vlaneseq
        %v227 = vshrl.u32 %v226, 7
        %v228 = vsub.s32 0, %v227
        %v229 = vrot.slane %v219, %v228
        %v230 = vlaneseq
        %v231 = vshrl.u32 %v230, 7
        %v232 = vsub.s32 1, %v231
        %v233 = vrot.slane %v219, %v232
        %v236 = vmul.f32 %v223, %v229
        %v237 = vmul.f32 %v223, %v233
        %v238 = vand.u32 2147483647, %v236
        %vm239 = vcmp.le.f32.partialorder %v238, 0.7853982
        %vm240 = vcmp.lt.s32.totalorder %v236, 0
        %v241 = vand.u32 %v236, 2139095040
        %v242 = vshrl.u32 %v241, 23
        %v243 = vsub.s32 %v242, 127
        %v244 = vand.u32 2147483647, %v236
        %v245 = vand.u32 %v244, 8388607
        %v246 = vor.u32 %v245, 8388608
        %v247 = vsub.s32 0, %v246
        %v248 = vadd.s32 %v243, 1
        %vm249 = vcmp.gt.s32.totalorder %v248, 0
        %v250 = vsel %vm249, %v248, 0
        %v251 = vshrl.u32 %v250, 5
        %v252 = vand.u32 %v250, 31
        %v253 = vsub.s32 32, %v252
        %v254 = vshrl.u32 683565275, %v253
        %v255 = vshll.u32 683565275, %v252
        %v256 = vshrl.u32 2475754826, %v253
        %v257 = vor.u32 %v255, %v256
        %v258 = vshll.u32 2475754826, %v252
        %v259 = vshrl.u32 2131351028, %v253
        %v260 = vor.u32 %v258, %v259
        %v261 = vshll.u32 2131351028, %v252
        %v262 = vshrl.u32 2102212464, %v253
        %v263 = vor.u32 %v261, %v262
        %v264 = vshll.u32 2102212464, %v252
        %v265 = vshrl.u32 920167782, %v253
        %v266 = vor.u32 %v264, %v265
        %v267 = vshll.u32 920167782, %v252
        %v268 = vshrl.u32 1326507024, %v253
        %v269 = vor.u32 %v267, %v268
        %vm270 = vcmp.lt.s32.totalorder %v251, 1
        %vm271 = vcmp.lt.s32.totalorder %v251, 2
        %vm272 = vcmp.lt.s32.totalorder %v251, 3
        %vm273 = vcmp.lt.s32.totalorder %v251, 4
        %v274 = vsel %vm270, %v254, %v257
        %v275 = vsel %vm273, %v263, 2102212464
        %v276 = vsel %vm272, %v260, %v275
        %v277 = vsel %vm271, %v274, %v276
        %v278 = vsel %vm270, %v257, %v260
        %v279 = vsel %vm273, %v266, 920167782
        %v280 = vsel %vm272, %v263, %v279
        %v281 = vsel %vm271, %v278, %v280
        %v282 = vsel %vm270, %v260, %v263
        %v283 = vsel %vm273, %v269, 1326507024
        %v284 = vsel %vm272, %v266, %v283
        %v285 = vsel %vm271, %v282, %v284
        %v286 = vshll.u32 %v246, 8
        %v287 = vmul.u32.u64.compose %v286, %v285
        %v288 = vextract.low.u32 %v287
        %v289 = vextract.high.u32 %v287
        %v290 = vmul.u32.u64.compose %v286, %v281
        %v291 = vextract.low.u32 %v290
        %v292 = vextract.high.u32 %v290
        %v293 = vmul.u32 %v286, %v277
        %v294 = vadd.s32 %v289, %v291
        %vm295 = vc.u32 %v289, %v291
        %v296 = vadd.s32 %v292, 1
        %v297 = vsel %vm295, %v296, %v292
        %v298 = vadd.s32 %v293, %v297
        %v299 = vadd.s32 %v298, 536870912
        %v300 = vshrl.u32 %v299, 30
        %v301 = vshll.u32 %v300, 30
        %v302 = vsub.s32 %v298, %v301
        %vm303 = vcmp.lt.s32.totalorder %v302, 0
        %v304 = vsub.s32 0, %v302
        %v305 = vsel %vm303, %v304, %v302
        %v306 = vclz %v305
        %v307 = vsub.s32 %v306, 2
        %vm308 = vcmp.gt.s32.totalorder 0, %v307
        %v309 = vsel %vm308, 0, %v307
        %v310 = vsub.s32 32, %v309
        %v311 = vshll.u32 %v302, %v309
        %v312 = vshrl.u32 %v294, %v310
        %v313 = vor.u32 %v311, %v312
        %v314 = vsub.s32 4294967266, %v309
        %v315 = vadd.s32 %v314, 127
        %v316 = vshll.u32 %v315, 23
        %v317 = vor.u32 4788187, %v316
        %v318 = vand.u32 2147483647, %v317
        %v320 = vcvt.s32.f32 %v313
        %v321 = vmul.f32 %v320, %v318
        %v322 = vxor.u32 %v321, 2147483648
        %v323 = vsel %vm240, %v322, %v321
        %v324 = vsub.s32 4, %v300
        %v325 = vsel %vm240, %v324, %v300
        %v326 = vsel %vm239, %v236, %v323
        %v327 = vsel %vm239, 0, %v325
        %v328 = vcosq.f32.pop %v326
        %v329 = vsinq.f32.pop %v326
        %vm330 = vweird.f32 %v236
        %v331 = vadd.s32 %v327, 3
        %v332 = vand.u32 %v331, 3
        %vm333 = vcmp.lt.s32.totalorder %v332, 2
        %vm334 = vcmp.eq.s32.totalorder %v332, 0
        %v335 = vxor.u32 %v329, 2147483648
        %v336 = vsel %vm334, %v328, %v335
        %vm337 = vcmp.eq.s32.totalorder %v332, 2
        %v338 = vxor.u32 %v328, 2147483648
        %v339 = vsel %vm337, %v338, %v329
        %v340 = vsel %vm333, %v336, %v339
        %v341 = vsel %vm330, nan, %v340
        %v342 = vand.u32 2147483647, %v237
        %vm343 = vcmp.le.f32.partialorder %v342, 0.7853982
        %vm344 = vcmp.lt.s32.totalorder %v237, 0
        %v345 = vand.u32 %v237, 2139095040
        %v346 = vshrl.u32 %v345, 23
        %v347 = vsub.s32 %v346, 127
        %v348 = vand.u32 2147483647, %v237
        %v349 = vand.u32 %v348, 8388607
        %v350 = vor.u32 %v349, 8388608
        %v351 = vsub.s32 0, %v350
        %v352 = vadd.s32 %v347, 1
        %vm353 = vcmp.gt.s32.totalorder %v352, 0
        %v354 = vsel %vm353, %v352, 0
        %v355 = vshrl.u32 %v354, 5
        %v356 = vand.u32 %v354, 31
        %v357 = vsub.s32 32, %v356
        %v358 = vshrl.u32 683565275, %v357
        %v359 = vshll.u32 683565275, %v356
        %v360 = vshrl.u32 2475754826, %v357
        %v361 = vor.u32 %v359, %v360
        %v362 = vshll.u32 2475754826, %v356
        %v363 = vshrl.u32 2131351028, %v357
        %v364 = vor.u32 %v362, %v363
        %v365 = vshll.u32 2131351028, %v356
        %v366 = vshrl.u32 2102212464, %v357
        %v367 = vor.u32 %v365, %v366
        %v368 = vshll.u32 2102212464, %v356
        %v369 = vshrl.u32 920167782, %v357
        %v370 = vor.u32 %v368, %v369
        %v371 = vshll.u32 920167782, %v356
        %v372 = vshrl.u32 1326507024, %v357
        %v373 = vor.u32 %v371, %v372
        %vm374 = vcmp.lt.s32.totalorder %v355, 1
        %vm375 = vcmp.lt.s32.totalorder %v355, 2
        %vm376 = vcmp.lt.s32.totalorder %v355, 3
        %vm377 = vcmp.lt.s32.totalorder %v355, 4
        %v378 = vsel %vm374, %v358, %v361
        %v379 = vsel %vm377, %v367, 2102212464
        %v380 = vsel %vm376, %v364, %v379
        %v381 = vsel %vm375, %v378, %v380
        %v382 = vsel %vm374, %v361, %v364
        %v383 = vsel %vm377, %v370, 920167782
        %v384 = vsel %vm376, %v367, %v383
        %v385 = vsel %vm375, %v382, %v384
        %v386 = vsel %vm374, %v364, %v367
        %v387 = vsel %vm377, %v373, 1326507024
        %v388 = vsel %vm376, %v370, %v387
        %v389 = vsel %vm375, %v386, %v388
        %v390 = vshll.u32 %v350, 8
        %v391 = vmul.u32.u64.compose %v390, %v389
        %v392 = vextract.low.u32 %v391
        %v393 = vextract.high.u32 %v391
        %v394 = vmul.u32.u64.compose %v390, %v385
        %v395 = vextract.low.u32 %v394
        %v396 = vextract.high.u32 %v394
        %v397 = vmul.u32 %v390, %v381
        %v398 = vadd.s32 %v393, %v395
        %vm399 = vc.u32 %v393, %v395
        %v400 = vadd.s32 %v396, 1
        %v401 = vsel %vm399, %v400, %v396
        %v402 = vadd.s32 %v397, %v401
        %v403 = vadd.s32 %v402, 536870912
        %v404 = vshrl.u32 %v403, 30
        %v405 = vshll.u32 %v404, 30
        %v406 = vsub.s32 %v402, %v405
        %vm407 = vcmp.lt.s32.totalorder %v406, 0
        %v408 = vsub.s32 0, %v406
        %v409 = vsel %vm407, %v408, %v406
        %v410 = vclz %v409
        %v411 = vsub.s32 %v410, 2
        %vm412 = vcmp.gt.s32.totalorder 0, %v411
        %v413 = vsel %vm412, 0, %v411
        %v414 = vsub.s32 32, %v413
        %v415 = vshll.u32 %v406, %v413
        %v416 = vshrl.u32 %v398, %v414
        %v417 = vor.u32 %v415, %v416
        %v418 = vsub.s32 4294967266, %v413
        %v419 = vadd.s32 %v418, 127
        %v420 = vshll.u32 %v419, 23
        %v421 = vor.u32 4788187, %v420
        %v422 = vand.u32 2147483647, %v421
        %v424 = vcvt.s32.f32 %v417
        %v425 = vmul.f32 %v424, %v422
        %v426 = vxor.u32 %v425, 2147483648
        %v427 = vsel %vm344, %v426, %v425
        %v428 = vsub.s32 4, %v404
        %v429 = vsel %vm344, %v428, %v404
        %v430 = vsel %vm343, %v237, %v427
        %v431 = vsel %vm343, 0, %v429
        %v432 = vcosq.f32.pop %v430
        %v433 = vsinq.f32.pop %v430
        %vm434 = vweird.f32 %v237
        %v435 = vadd.s32 %v431, 3
        %v436 = vand.u32 %v435, 3
        %vm437 = vcmp.lt.s32.totalorder %v436, 2
        %vm438 = vcmp.eq.s32.totalorder %v436, 0
        %v439 = vxor.u32 %v433, 2147483648
        %v440 = vsel %vm438, %v432, %v439
        %vm441 = vcmp.eq.s32.totalorder %v436, 2
        %v442 = vxor.u32 %v432, 2147483648
        %v443 = vsel %vm441, %v442, %v433
        %v444 = vsel %vm437, %v440, %v443
        %v445 = vsel %vm434, nan, %v444
        %v446 = vand.u32 2147483647, %v236
        %vm447 = vcmp.le.f32.partialorder %v446, 0.7853982
        %vm448 = vcmp.lt.s32.totalorder %v236, 0
        %v449 = vand.u32 %v236, 2139095040
        %v450 = vshrl.u32 %v449, 23
        %v451 = vsub.s32 %v450, 127
        %v452 = vand.u32 2147483647, %v236
        %v453 = vand.u32 %v452, 8388607
        %v454 = vor.u32 %v453, 8388608
        %v455 = vsub.s32 0, %v454
        %v456 = vadd.s32 %v451, 1
        %vm457 = vcmp.gt.s32.totalorder %v456, 0
        %v458 = vsel %vm457, %v456, 0
        %v459 = vshrl.u32 %v458, 5
        %v460 = vand.u32 %v458, 31
        %v461 = vsub.s32 32, %v460
        %v462 = vshrl.u32 683565275, %v461
        %v463 = vshll.u32 683565275, %v460
        %v464 = vshrl.u32 2475754826, %v461
        %v465 = vor.u32 %v463, %v464
        %v466 = vshll.u32 2475754826, %v460
        %v467 = vshrl.u32 2131351028, %v461
        %v468 = vor.u32 %v466, %v467
        %v469 = vshll.u32 2131351028, %v460
        %v470 = vshrl.u32 2102212464, %v461
        %v471 = vor.u32 %v469, %v470
        %v472 = vshll.u32 2102212464, %v460
        %v473 = vshrl.u32 920167782, %v461
        %v474 = vor.u32 %v472, %v473
        %v475 = vshll.u32 920167782, %v460
        %v476 = vshrl.u32 1326507024, %v461
        %v477 = vor.u32 %v475, %v476
        %vm478 = vcmp.lt.s32.totalorder %v459, 1
        %vm479 = vcmp.lt.s32.totalorder %v459, 2
        %vm480 = vcmp.lt.s32.totalorder %v459, 3
        %vm481 = vcmp.lt.s32.totalorder %v459, 4
        %v482 = vsel %vm478, %v462, %v465
        %v483 = vsel %vm481, %v471, 2102212464
        %v484 = vsel %vm480, %v468, %v483
        %v485 = vsel %vm479, %v482, %v484
        %v486 = vsel %vm478, %v465, %v468
        %v487 = vsel %vm481, %v474, 920167782
        %v488 = vsel %vm480, %v471, %v487
        %v489 = vsel %vm479, %v486, %v488
        %v490 = vsel %vm478, %v468, %v471
        %v491 = vsel %vm481, %v477, 1326507024
        %v492 = vsel %vm480, %v474, %v491
        %v493 = vsel %vm479, %v490, %v492
        %v494 = vshll.u32 %v454, 8
        %v495 = vmul.u32.u64.compose %v494, %v493
        %v496 = vextract.low.u32 %v495
        %v497 = vextract.high.u32 %v495
        %v498 = vmul.u32.u64.compose %v494, %v489
        %v499 = vextract.low.u32 %v498
        %v500 = vextract.high.u32 %v498
        %v501 = vmul.u32 %v494, %v485
        %v502 = vadd.s32 %v497, %v499
        %vm503 = vc.u32 %v497, %v499
        %v504 = vadd.s32 %v500, 1
        %v505 = vsel %vm503, %v504, %v500
        %v506 = vadd.s32 %v501, %v505
        %v507 = vadd.s32 %v506, 536870912
        %v508 = vshrl.u32 %v507, 30
        %v509 = vshll.u32 %v508, 30
        %v510 = vsub.s32 %v506, %v509
        %vm511 = vcmp.lt.s32.totalorder %v510, 0
        %v512 = vsub.s32 0, %v510
        %v513 = vsel %vm511, %v512, %v510
        %v514 = vclz %v513
        %v515 = vsub.s32 %v514, 2
        %vm516 = vcmp.gt.s32.totalorder 0, %v515
        %v517 = vsel %vm516, 0, %v515
        %v518 = vsub.s32 32, %v517
        %v519 = vshll.u32 %v510, %v517
        %v520 = vshrl.u32 %v502, %v518
        %v521 = vor.u32 %v519, %v520
        %v522 = vsub.s32 4294967266, %v517
        %v523 = vadd.s32 %v522, 127
        %v524 = vshll.u32 %v523, 23
        %v525 = vor.u32 4788187, %v524
        %v526 = vand.u32 2147483647, %v525
        %v528 = vcvt.s32.f32 %v521
        %v529 = vmul.f32 %v528, %v526
        %v530 = vxor.u32 %v529, 2147483648
        %v531 = vsel %vm448, %v530, %v529
        %v532 = vsub.s32 4, %v508
        %v533 = vsel %vm448, %v532, %v508
        %v534 = vsel %vm447, %v236, %v531
        %v535 = vsel %vm447, 0, %v533
        %v536 = vcosq.f32.pop %v534
        %v537 = vsinq.f32.pop %v534
        %vm538 = vweird.f32 %v236
        %v539 = vand.u32 %v535, 3
        %vm540 = vcmp.lt.s32.totalorder %v539, 2
        %vm541 = vcmp.eq.s32.totalorder %v539, 0
        %v542 = vxor.u32 %v537, 2147483648
        %v543 = vsel %vm541, %v536, %v542
        %vm544 = vcmp.eq.s32.totalorder %v539, 2
        %v545 = vxor.u32 %v536, 2147483648
        %v546 = vsel %vm544, %v545, %v537
        %v547 = vsel %vm540, %v543, %v546
        %v548 = vsel %vm538, nan, %v547
        %v549 = vand.u32 2147483647, %v237
        %vm550 = vcmp.le.f32.partialorder %v549, 0.7853982
        %vm551 = vcmp.lt.s32.totalorder %v237, 0
        %v552 = vand.u32 %v237, 2139095040
        %v553 = vshrl.u32 %v552, 23
        %v554 = vsub.s32 %v553, 127
        %v555 = vand.u32 2147483647, %v237
        %v556 = vand.u32 %v555, 8388607
        %v557 = vor.u32 %v556, 8388608
        %v558 = vsub.s32 0, %v557
        %v559 = vadd.s32 %v554, 1
        %vm560 = vcmp.gt.s32.totalorder %v559, 0
        %v561 = vsel %vm560, %v559, 0
        %v562 = vshrl.u32 %v561, 5
        %v563 = vand.u32 %v561, 31
        %v564 = vsub.s32 32, %v563
        %v565 = vshrl.u32 683565275, %v564
        %v566 = vshll.u32 683565275, %v563
        %v567 = vshrl.u32 2475754826, %v564
        %v568 = vor.u32 %v566, %v567
        %v569 = vshll.u32 2475754826, %v563
        %v570 = vshrl.u32 2131351028, %v564
        %v571 = vor.u32 %v569, %v570
        %v572 = vshll.u32 2131351028, %v563
        %v573 = vshrl.u32 2102212464, %v564
        %v574 = vor.u32 %v572, %v573
        %v575 = vshll.u32 2102212464, %v563
        %v576 = vshrl.u32 920167782, %v564
        %v577 = vor.u32 %v575, %v576
        %v578 = vshll.u32 920167782, %v563
        %v579 = vshrl.u32 1326507024, %v564
        %v580 = vor.u32 %v578, %v579
        %vm581 = vcmp.lt.s32.totalorder %v562, 1
        %vm582 = vcmp.lt.s32.totalorder %v562, 2
        %vm583 = vcmp.lt.s32.totalorder %v562, 3
        %vm584 = vcmp.lt.s32.totalorder %v562, 4
        %v585 = vsel %vm581, %v565, %v568
        %v586 = vsel %vm584, %v574, 2102212464
        %v587 = vsel %vm583, %v571, %v586
        %v588 = vsel %vm582, %v585, %v587
        %v589 = vsel %vm581, %v568, %v571
        %v590 = vsel %vm584, %v577, 920167782
        %v591 = vsel %vm583, %v574, %v590
        %v592 = vsel %vm582, %v589, %v591
        %v593 = vsel %vm581, %v571, %v574
        %v594 = vsel %vm584, %v580, 1326507024
        %v595 = vsel %vm583, %v577, %v594
        %v596 = vsel %vm582, %v593, %v595
        %v597 = vshll.u32 %v557, 8
        %v598 = vmul.u32.u64.compose %v597, %v596
        %v599 = vextract.low.u32 %v598
        %v600 = vextract.high.u32 %v598
        %v601 = vmul.u32.u64.compose %v597, %v592
        %v602 = vextract.low.u32 %v601
        %v603 = vextract.high.u32 %v601
        %v604 = vmul.u32 %v597, %v588
        %v605 = vadd.s32 %v600, %v602
        %vm606 = vc.u32 %v600, %v602
        %v607 = vadd.s32 %v603, 1
        %v608 = vsel %vm606, %v607, %v603
        %v609 = vadd.s32 %v604, %v608
        %v610 = vadd.s32 %v609, 536870912
        %v611 = vshrl.u32 %v610, 30
        %v612 = vshll.u32 %v611, 30
        %v613 = vsub.s32 %v609, %v612
        %vm614 = vcmp.lt.s32.totalorder %v613, 0
        %v615 = vsub.s32 0, %v613
        %v616 = vsel %vm614, %v615, %v613
        %v617 = vclz %v616
        %v618 = vsub.s32 %v617, 2
        %vm619 = vcmp.gt.s32.totalorder 0, %v618
        %v620 = vsel %vm619, 0, %v618
        %v621 = vsub.s32 32, %v620
        %v622 = vshll.u32 %v613, %v620
        %v623 = vshrl.u32 %v605, %v621
        %v624 = vor.u32 %v622, %v623
        %v625 = vsub.s32 4294967266, %v620
        %v626 = vadd.s32 %v625, 127
        %v627 = vshll.u32 %v626, 23
        %v628 = vor.u32 4788187, %v627
        %v629 = vand.u32 2147483647, %v628
        %v631 = vcvt.s32.f32 %v624
        %v632 = vmul.f32 %v631, %v629
        %v633 = vxor.u32 %v632, 2147483648
        %v634 = vsel %vm551, %v633, %v632
        %v635 = vsub.s32 4, %v611
        %v636 = vsel %vm551, %v635, %v611
        %v637 = vsel %vm550, %v237, %v634
        %v638 = vsel %vm550, 0, %v636
        %v639 = vcosq.f32.pop %v637
        %v640 = vsinq.f32.pop %v637
        %vm641 = vweird.f32 %v237
        %v642 = vand.u32 %v638, 3
        %vm643 = vcmp.lt.s32.totalorder %v642, 2
        %vm644 = vcmp.eq.s32.totalorder %v642, 0
        %v645 = vxor.u32 %v640, 2147483648
        %v646 = vsel %vm644, %v639, %v645
        %vm647 = vcmp.eq.s32.totalorder %v642, 2
        %v648 = vxor.u32 %v639, 2147483648
        %v649 = vsel %vm647, %v648, %v640
        %v650 = vsel %vm643, %v646, %v649
        %v651 = vsel %vm641, nan, %v650
        %v652 = vld [vmem:[%s210] sm:$0xff]
        %v653 = vld [vmem:[%s210 + $0x8] sm:$0xff]
        %v654 = vld [vmem:[%s2] sm:$0xff]
        %v655 = vld [vmem:[%s2 + $0x8] sm:$0xff]
        %v656 = vld [vmem:[%s2 + $0x10] sm:$0xff]
        %v657 = vld [vmem:[%s2 + $0x18] sm:$0xff]
        %v658 = vld [vmem:[%s3 + $0x8] sm:$0xff]
        %v659 = vld [vmem:[%s3 + $0x10] sm:$0xff]
        %v660 = vld [vmem:[%s3 + $0x18] sm:$0xff]
        %v661 = vld [vmem:[%s3 + $0x20] sm:$0xff]
        %663 = vset.pattern.permute.xlu0 0
        %664 = vperm.xlu0 %663, %v658
        %v665 = vpop.permute.xlu0 %664
        %668 = vset.pattern.permute.xlu0 0
        %669 = vperm.xlu0 %668, %v659
        %v670 = vpop.permute.xlu0 %669
        %673 = vset.pattern.permute.xlu0 0
        %674 = vperm.xlu0 %673, %v660
        %v675 = vpop.permute.xlu0 %674
        %678 = vset.pattern.permute.xlu0 0
        %679 = vperm.xlu0 %678, %v661
        %v680 = vpop.permute.xlu0 %679
        %vm682 = vcmask 261120
        %v684 = vsel %vm682, %v654, 0
        %v687 = vsel %vm682, %v655, 0
        %v690 = vsel %vm682, %v656, 0
        %v693 = vsel %vm682, %v657, 0
        %695 = vmatprep.subr.mxu0 %v653
        %696 = vmatpush1.msra.mxu0 %v652
        %697 = vmatprep.subr.mxu0 %v445
        %698 = vmatpush1.msra.mxu0 %v341
        %699 = vmatprep.subr.mxu0 %v651
        %700 = vmatpush1.msra.mxu0 %v548
        %701 = vmatprep.subr.mxu0 0.0
        %702 = vmatpush1.msra.mxu0 0.0
        %703 = vmatprep.subr.mxu0 0.0
        %704 = vmatpush1.msra.mxu0 0.0
        %705 = vmatprep.subr.mxu0 0.0
        %706 = vmatpush1.msra.mxu0 0.0
        %707 = vmatprep.subr.mxu0 0.0
        %708 = vmatpush1.msra.mxu0 0.0
        %709 = vmatprep.subr.mxu0 0.0
        %710 = vmatpush1.msra.mxu0 0.0
        %711 = vmatprep.subr.mxu0 0.0
        %712 = vmatpush1.msra.mxu0 0.0
        %713 = vmatprep.subr.mxu0 0.0
        %714 = vmatpush1.msra.mxu0 0.0
        %715 = vmatprep.subr.mxu0 0.0
        %716 = vmatpush1.msra.mxu0 0.0
        %717 = vmatprep.subr.mxu0 0.0
        %718 = vmatpush1.msra.mxu0 0.0
        %719 = vmatprep.subr.mxu0 0.0
        %720 = vmatpush1.msra.mxu0 0.0
        %721 = vmatprep.subr.mxu0 0.0
        %722 = vmatpush1.msra.mxu0 0.0
        %723 = vmatprep.subr.mxu0 0.0
        %724 = vmatpush1.msra.mxu0 0.0
        %725 = vmatprep.subr.mxu0 0.0
        %726 = vmatpush1.msra.mxu0 0.0
        %727 = vmatprep.subr.mxu0 0.0
        %728 = vmatpush1.msra.mxu0 0.0
        %729 = vmatprep.subr.mxu0 0.0
        %730 = vmatpush1.msra.mxu0 0.0
        %731 = vmatprep.subr.mxu0 0.0
        %732 = vmatpush1.msra.mxu0 0.0
        %733 = vmatprep.subr.mxu0 0.0
        %734 = vmatpush1.msra.mxu0 0.0
        %735 = vmatprep.subr.mxu0 0.0
        %736 = vmatpush1.msra.mxu0 0.0
        %737 = vmatprep.subr.mxu0 0.0
        %738 = vmatpush1.msra.mxu0 0.0
        %739 = vmatprep.subr.mxu0 0.0
        %740 = vmatpush1.msra.mxu0 0.0
        %741 = vmatprep.subr.mxu0 0.0
        %742 = vmatpush1.msra.mxu0 0.0
        %743 = vmatprep.subr.mxu0 0.0
        %744 = vmatpush1.msra.mxu0 0.0
        %745 = vmatprep.subr.mxu0 0.0
        %746 = vmatpush1.msra.mxu0 0.0
        %747 = vmatprep.subr.mxu0 0.0
        %748 = vmatpush1.msra.mxu0 0.0
        %749 = vmatprep.subr.mxu0 0.0
        %750 = vmatpush1.msra.mxu0 0.0
        %751 = vmatprep.subr.mxu0 0.0
        %752 = vmatpush1.msra.mxu0 0.0
        %753 = vmatprep.subr.mxu0 0.0
        %754 = vmatpush1.msra.mxu0 0.0
        %755 = vmatprep.subr.mxu0 0.0
        %756 = vmatpush1.msra.mxu0 0.0
        %757 = vmatprep.subr.mxu0 0.0
        %758 = vmatpush1.msra.mxu0 0.0
        %759 = vmatprep.mubr.f32.mxu0 0.0
        %760 = vmatmul.mubr.f32.gmra.mrb[0].mxu0 %v684
        %v761 = vpop.f32.mrb[0].mxu0
        %v762 = vadd.f32 %v665, %v761
        %v763 = vpop.f32.mrb[0].mxu0
        %v764 = vadd.f32 %v665, %v763
        %765 = vmatprep.mubr.f32.mxu0 0.0
        %766 = vmatmul.mubr.f32.gmra.mrb[0].mxu0 %v687
        %v767 = vpop.f32.mrb[0].mxu0
        %v768 = vadd.f32 %v670, %v767
        %v769 = vpop.f32.mrb[0].mxu0
        %v770 = vadd.f32 %v670, %v769
        %771 = vmatprep.mubr.f32.mxu0 0.0
        %772 = vmatmul.mubr.f32.gmra.mrb[0].mxu0 %v690
        %v773 = vpop.f32.mrb[0].mxu0
        %v774 = vadd.f32 %v675, %v773
        %v775 = vpop.f32.mrb[0].mxu0
        %v776 = vadd.f32 %v675, %v775
        %777 = vmatprep.mubr.f32.mxu0 0.0
        %778 = vmatmul.mubr.f32.gmra.mrb[0].mxu0 %v693
        %v779 = vpop.f32.mrb[0].mxu0
        %v780 = vadd.f32 %v680, %v779
        %v781 = vpop.f32.mrb[0].mxu0
        %v782 = vadd.f32 %v680, %v781
        %783 = vdwg.mxu0
        %v784 = vmul.f32 %v762, 0.5
        %v785 = vmul.f32 %v764, 0.5
        %v786 = vmul.f32 %v768, 0.5
        %v787 = vmul.f32 %v770, 0.5
        %v788 = vmul.f32 %v774, 0.5
        %v789 = vmul.f32 %v776, 0.5
        %v790 = vmul.f32 %v780, 0.5
        %v791 = vmul.f32 %v782, 0.5
        %v792 = vtanh.pop %v784
        %v793 = vtanh.pop %v785
        %v794 = vtanh.pop %v786
        %v795 = vtanh.pop %v787
        %v796 = vtanh.pop %v788
        %v797 = vtanh.pop %v789
        %v798 = vtanh.pop %v790
        %v799 = vtanh.pop %v791
        %v800 = vmul.f32 %v784, %v792
        %v801 = vmul.f32 %v785, %v793
        %v802 = vmul.f32 %v786, %v794
        %v803 = vmul.f32 %v787, %v795
        %v804 = vmul.f32 %v788, %v796
        %v805 = vmul.f32 %v789, %v797
        %v806 = vmul.f32 %v790, %v798
        %v807 = vmul.f32 %v791, %v799
        %v808 = vadd.f32 %v784, %v800
        %v809 = vadd.f32 %v785, %v801
        %v810 = vadd.f32 %v786, %v802
        %v811 = vadd.f32 %v787, %v803
        %v812 = vadd.f32 %v788, %v804
        %v813 = vadd.f32 %v789, %v805
        %v814 = vadd.f32 %v790, %v806
        %v815 = vadd.f32 %v791, %v807
        %v816 = vld [vmem:[%s2 + $0x20] sm:$0xff]
        %v817 = vld [vmem:[%s2 + $0x28] sm:$0xff]
        %v818 = vld [vmem:[%s2 + $0x30] sm:$0xff]
        %v819 = vld [vmem:[%s2 + $0x38] sm:$0xff]
        %v820 = vld [vmem:[%s3 + $0x28] sm:$0xff]
        %v821 = vld [vmem:[%s3 + $0x30] sm:$0xff]
        %v822 = vld [vmem:[%s3 + $0x38] sm:$0xff]
        %v823 = vld [vmem:[%s3 + $0x40] sm:$0xff]
        %825 = vset.pattern.permute.xlu0 0
        %826 = vperm.xlu0 %825, %v820
        %v827 = vpop.permute.xlu0 %826
        %830 = vset.pattern.permute.xlu0 0
        %831 = vperm.xlu0 %830, %v821
        %v832 = vpop.permute.xlu0 %831
        %835 = vset.pattern.permute.xlu0 0
        %836 = vperm.xlu0 %835, %v822
        %v837 = vpop.permute.xlu0 %836
        %840 = vset.pattern.permute.xlu0 0
        %841 = vperm.xlu0 %840, %v823
        %v842 = vpop.permute.xlu0 %841
        %v845 = vsel %vm682, %v816, 0
        %v848 = vsel %vm682, %v817, 0
        %v851 = vsel %vm682, %v818, 0
        %v854 = vsel %vm682, %v819, 0
        %856 = vmatprep.subr.mxu0 %v809
        %857 = vmatpush1.msra.mxu0 %v808
        %858 = vmatprep.subr.mxu0 %v811
        %859 = vmatpush1.msra.mxu0 %v810
        %860 = vmatprep.subr.mxu0 %v813
        %861 = vmatpush1.msra.mxu0 %v812
        %862 = vmatprep.subr.mxu0 %v815
        %863 = vmatpush1.msra.mxu0 %v814
        %864 = vmatprep.subr.mxu0 0.0
        %865 = vmatpush1.msra.mxu0 0.0
        %866 = vmatprep.subr.mxu0 0.0
        %867 = vmatpush1.msra.mxu0 0.0
        %868 = vmatprep.subr.mxu0 0.0
        %869 = vmatpush1.msra.mxu0 0.0
        %870 = vmatprep.subr.mxu0 0.0
        %871 = vmatpush1.msra.mxu0 0.0
        %872 = vmatprep.subr.mxu0 0.0
        %873 = vmatpush1.msra.mxu0 0.0
        %874 = vmatprep.subr.mxu0 0.0
        %875 = vmatpush1.msra.mxu0 0.0
        %876 = vmatprep.subr.mxu0 0.0
        %877 = vmatpush1.msra.mxu0 0.0
        %878 = vmatprep.subr.mxu0 0.0
        %879 = vmatpush1.msra.mxu0 0.0
        %880 = vmatprep.subr.mxu0 0.0
        %881 = vmatpush1.msra.mxu0 0.0
        %882 = vmatprep.subr.mxu0 0.0
        %883 = vmatpush1.msra.mxu0 0.0
        %884 = vmatprep.subr.mxu0 0.0
        %885 = vmatpush1.msra.mxu0 0.0
        %886 = vmatprep.subr.mxu0 0.0
        %887 = vmatpush1.msra.mxu0 0.0
        %888 = vmatprep.subr.mxu0 0.0
        %889 = vmatpush1.msra.mxu0 0.0
        %890 = vmatprep.subr.mxu0 0.0
        %891 = vmatpush1.msra.mxu0 0.0
        %892 = vmatprep.subr.mxu0 0.0
        %893 = vmatpush1.msra.mxu0 0.0
        %894 = vmatprep.subr.mxu0 0.0
        %895 = vmatpush1.msra.mxu0 0.0
        %896 = vmatprep.subr.mxu0 0.0
        %897 = vmatpush1.msra.mxu0 0.0
        %898 = vmatprep.subr.mxu0 0.0
        %899 = vmatpush1.msra.mxu0 0.0
        %900 = vmatprep.subr.mxu0 0.0
        %901 = vmatpush1.msra.mxu0 0.0
        %902 = vmatprep.subr.mxu0 0.0
        %903 = vmatpush1.msra.mxu0 0.0
        %904 = vmatprep.subr.mxu0 0.0
        %905 = vmatpush1.msra.mxu0 0.0
        %906 = vmatprep.subr.mxu0 0.0
        %907 = vmatpush1.msra.mxu0 0.0
        %908 = vmatprep.subr.mxu0 0.0
        %909 = vmatpush1.msra.mxu0 0.0
        %910 = vmatprep.subr.mxu0 0.0
        %911 = vmatpush1.msra.mxu0 0.0
        %912 = vmatprep.subr.mxu0 0.0
        %913 = vmatpush1.msra.mxu0 0.0
        %914 = vmatprep.subr.mxu0 0.0
        %915 = vmatpush1.msra.mxu0 0.0
        %916 = vmatprep.subr.mxu0 0.0
        %917 = vmatpush1.msra.mxu0 0.0
        %918 = vmatprep.subr.mxu0 0.0
        %919 = vmatpush1.msra.mxu0 0.0
        %920 = vmatprep.mubr.f32.mxu0 0.0
        %921 = vmatmul.mubr.f32.gmra.mrb[0].mxu0 %v845
        %v922 = vpop.f32.mrb[0].mxu0
        %v923 = vadd.f32 %v827, %v922
        %v924 = vpop.f32.mrb[0].mxu0
        %v925 = vadd.f32 %v827, %v924
        %926 = vmatprep.mubr.f32.mxu0 0.0
        %927 = vmatmul.mubr.f32.gmra.mrb[0].mxu0 %v848
        %v928 = vpop.f32.mrb[0].mxu0
        %v929 = vadd.f32 %v832, %v928
        %v930 = vpop.f32.mrb[0].mxu0
        %v931 = vadd.f32 %v832, %v930
        %932 = vmatprep.mubr.f32.mxu0 0.0
        %933 = vmatmul.mubr.f32.gmra.mrb[0].mxu0 %v851
        %v934 = vpop.f32.mrb[0].mxu0
        %v935 = vadd.f32 %v837, %v934
        %v936 = vpop.f32.mrb[0].mxu0
        %v937 = vadd.f32 %v837, %v936
        %938 = vmatprep.mubr.f32.mxu0 0.0
        %939 = vmatmul.mubr.f32.gmra.mrb[0].mxu0 %v854
        %v940 = vpop.f32.mrb[0].mxu0
        %v941 = vadd.f32 %v842, %v940
        %v942 = vpop.f32.mrb[0].mxu0
        %v943 = vadd.f32 %v842, %v942
        %944 = vdwg.mxu0
        %v945 = vmul.f32 %v923, 0.5
        %v946 = vmul.f32 %v925, 0.5
        %v947 = vmul.f32 %v929, 0.5
        %v948 = vmul.f32 %v931, 0.5
        %v949 = vmul.f32 %v935, 0.5
        %v950 = vmul.f32 %v937, 0.5
        %v951 = vmul.f32 %v941, 0.5
        %v952 = vmul.f32 %v943, 0.5
        %v953 = vtanh.pop %v945
        %v954 = vtanh.pop %v946
        %v955 = vtanh.pop %v947
        %v956 = vtanh.pop %v948
        %v957 = vtanh.pop %v949
        %v958 = vtanh.pop %v950
        %v959 = vtanh.pop %v951
        %v960 = vtanh.pop %v952
        %v961 = vmul.f32 %v945, %v953
        %v962 = vmul.f32 %v946, %v954
        %v963 = vmul.f32 %v947, %v955
        %v964 = vmul.f32 %v948, %v956
        %v965 = vmul.f32 %v949, %v957
        %v966 = vmul.f32 %v950, %v958
        %v967 = vmul.f32 %v951, %v959
        %v968 = vmul.f32 %v952, %v960
        %v969 = vadd.f32 %v945, %v961
        %v970 = vadd.f32 %v946, %v962
        %v971 = vadd.f32 %v947, %v963
        %v972 = vadd.f32 %v948, %v964
        %v973 = vadd.f32 %v949, %v965
        %v974 = vadd.f32 %v950, %v966
        %v975 = vadd.f32 %v951, %v967
        %v976 = vadd.f32 %v952, %v968
        %v977 = vld [vmem:[%s2 + $0x40] sm:$0xff]
        %v978 = vld [vmem:[%s2 + $0x48] sm:$0xff]
        %v979 = vld [vmem:[%s2 + $0x50] sm:$0xff]
        %v980 = vld [vmem:[%s2 + $0x58] sm:$0xff]
        %v981 = vld [vmem:[%s3 + $0x48] sm:$0xff]
        %v982 = vld [vmem:[%s3 + $0x50] sm:$0xff]
        %v983 = vld [vmem:[%s3 + $0x58] sm:$0xff]
        %v984 = vld [vmem:[%s3 + $0x60] sm:$0xff]
        %986 = vset.pattern.permute.xlu0 0
        %987 = vperm.xlu0 %986, %v981
        %v988 = vpop.permute.xlu0 %987
        %991 = vset.pattern.permute.xlu0 0
        %992 = vperm.xlu0 %991, %v982
        %v993 = vpop.permute.xlu0 %992
        %996 = vset.pattern.permute.xlu0 0
        %997 = vperm.xlu0 %996, %v983
        %v998 = vpop.permute.xlu0 %997
        %1001 = vset.pattern.permute.xlu0 0
        %1002 = vperm.xlu0 %1001, %v984
        %v1003 = vpop.permute.xlu0 %1002
        %v1006 = vsel %vm682, %v977, 0
        %v1009 = vsel %vm682, %v978, 0
        %v1012 = vsel %vm682, %v979, 0
        %v1015 = vsel %vm682, %v980, 0
        %1017 = vmatprep.subr.mxu0 %v970
        %1018 = vmatpush1.msra.mxu0 %v969
        %1019 = vmatprep.subr.mxu0 %v972
        %1020 = vmatpush1.msra.mxu0 %v971
        %1021 = vmatprep.subr.mxu0 %v974
        %1022 = vmatpush1.msra.mxu0 %v973
        %1023 = vmatprep.subr.mxu0 %v976
        %1024 = vmatpush1.msra.mxu0 %v975
        %1025 = vmatprep.subr.mxu0 0.0
        %1026 = vmatpush1.msra.mxu0 0.0
        %1027 = vmatprep.subr.mxu0 0.0
        %1028 = vmatpush1.msra.mxu0 0.0
        %1029 = vmatprep.subr.mxu0 0.0
        %1030 = vmatpush1.msra.mxu0 0.0
        %1031 = vmatprep.subr.mxu0 0.0
        %1032 = vmatpush1.msra.mxu0 0.0
        %1033 = vmatprep.subr.mxu0 0.0
        %1034 = vmatpush1.msra.mxu0 0.0
        %1035 = vmatprep.subr.mxu0 0.0
        %1036 = vmatpush1.msra.mxu0 0.0
        %1037 = vmatprep.subr.mxu0 0.0
        %1038 = vmatpush1.msra.mxu0 0.0
        %1039 = vmatprep.subr.mxu0 0.0
        %1040 = vmatpush1.msra.mxu0 0.0
        %1041 = vmatprep.subr.mxu0 0.0
        %1042 = vmatpush1.msra.mxu0 0.0
        %1043 = vmatprep.subr.mxu0 0.0
        %1044 = vmatpush1.msra.mxu0 0.0
        %1045 = vmatprep.subr.mxu0 0.0
        %1046 = vmatpush1.msra.mxu0 0.0
        %1047 = vmatprep.subr.mxu0 0.0
        %1048 = vmatpush1.msra.mxu0 0.0
        %1049 = vmatprep.subr.mxu0 0.0
        %1050 = vmatpush1.msra.mxu0 0.0
        %1051 = vmatprep.subr.mxu0 0.0
        %1052 = vmatpush1.msra.mxu0 0.0
        %1053 = vmatprep.subr.mxu0 0.0
        %1054 = vmatpush1.msra.mxu0 0.0
        %1055 = vmatprep.subr.mxu0 0.0
        %1056 = vmatpush1.msra.mxu0 0.0
        %1057 = vmatprep.subr.mxu0 0.0
        %1058 = vmatpush1.msra.mxu0 0.0
        %1059 = vmatprep.subr.mxu0 0.0
        %1060 = vmatpush1.msra.mxu0 0.0
        %1061 = vmatprep.subr.mxu0 0.0
        %1062 = vmatpush1.msra.mxu0 0.0
        %1063 = vmatprep.subr.mxu0 0.0
        %1064 = vmatpush1.msra.mxu0 0.0
        %1065 = vmatprep.subr.mxu0 0.0
        %1066 = vmatpush1.msra.mxu0 0.0
        %1067 = vmatprep.subr.mxu0 0.0
        %1068 = vmatpush1.msra.mxu0 0.0
        %1069 = vmatprep.subr.mxu0 0.0
        %1070 = vmatpush1.msra.mxu0 0.0
        %1071 = vmatprep.subr.mxu0 0.0
        %1072 = vmatpush1.msra.mxu0 0.0
        %1073 = vmatprep.subr.mxu0 0.0
        %1074 = vmatpush1.msra.mxu0 0.0
        %1075 = vmatprep.subr.mxu0 0.0
        %1076 = vmatpush1.msra.mxu0 0.0
        %1077 = vmatprep.subr.mxu0 0.0
        %1078 = vmatpush1.msra.mxu0 0.0
        %1079 = vmatprep.subr.mxu0 0.0
        %1080 = vmatpush1.msra.mxu0 0.0
        %1081 = vmatprep.mubr.f32.mxu0 0.0
        %1082 = vmatmul.mubr.f32.gmra.mrb[0].mxu0 %v1006
        %v1083 = vpop.f32.mrb[0].mxu0
        %v1084 = vadd.f32 %v988, %v1083
        %v1085 = vpop.f32.mrb[0].mxu0
        %v1086 = vadd.f32 %v988, %v1085
        %1087 = vmatprep.mubr.f32.mxu0 0.0
        %1088 = vmatmul.mubr.f32.gmra.mrb[0].mxu0 %v1009
        %v1089 = vpop.f32.mrb[0].mxu0
        %v1090 = vadd.f32 %v993, %v1089
        %v1091 = vpop.f32.mrb[0].mxu0
        %v1092 = vadd.f32 %v993, %v1091
        %1093 = vmatprep.mubr.f32.mxu0 0.0
        %1094 = vmatmul.mubr.f32.gmra.mrb[0].mxu0 %v1012
        %v1095 = vpop.f32.mrb[0].mxu0
        %v1096 = vadd.f32 %v998, %v1095
        %v1097 = vpop.f32.mrb[0].mxu0
        %v1098 = vadd.f32 %v998, %v1097
        %1099 = vmatprep.mubr.f32.mxu0 0.0
        %1100 = vmatmul.mubr.f32.gmra.mrb[0].mxu0 %v1015
        %v1101 = vpop.f32.mrb[0].mxu0
        %v1102 = vadd.f32 %v1003, %v1101
        %v1103 = vpop.f32.mrb[0].mxu0
        %v1104 = vadd.f32 %v1003, %v1103
        %1105 = vdwg.mxu0
        %v1106 = vmul.f32 %v1084, 0.5
        %v1107 = vmul.f32 %v1086, 0.5
        %v1108 = vmul.f32 %v1090, 0.5
        %v1109 = vmul.f32 %v1092, 0.5
        %v1110 = vmul.f32 %v1096, 0.5
        %v1111 = vmul.f32 %v1098, 0.5
        %v1112 = vmul.f32 %v1102, 0.5
        %v1113 = vmul.f32 %v1104, 0.5
        %v1114 = vtanh.pop %v1106
        %v1115 = vtanh.pop %v1107
        %v1116 = vtanh.pop %v1108
        %v1117 = vtanh.pop %v1109
        %v1118 = vtanh.pop %v1110
        %v1119 = vtanh.pop %v1111
        %v1120 = vtanh.pop %v1112
        %v1121 = vtanh.pop %v1113
        %v1122 = vmul.f32 %v1106, %v1114
        %v1123 = vmul.f32 %v1107, %v1115
        %v1124 = vmul.f32 %v1108, %v1116
        %v1125 = vmul.f32 %v1109, %v1117
        %v1126 = vmul.f32 %v1110, %v1118
        %v1127 = vmul.f32 %v1111, %v1119
        %v1128 = vmul.f32 %v1112, %v1120
        %v1129 = vmul.f32 %v1113, %v1121
        %v1130 = vadd.f32 %v1106, %v1122
        %v1131 = vadd.f32 %v1107, %v1123
        %v1132 = vadd.f32 %v1108, %v1124
        %v1133 = vadd.f32 %v1109, %v1125
        %v1134 = vadd.f32 %v1110, %v1126
        %v1135 = vadd.f32 %v1111, %v1127
        %v1136 = vadd.f32 %v1112, %v1128
        %v1137 = vadd.f32 %v1113, %v1129
        %v1138 = vld [vmem:[%s2 + $0x60] sm:$0xff]
        %v1139 = vld [vmem:[%s2 + $0x68] sm:$0xff]
        %v1140 = vld [vmem:[%s2 + $0x70] sm:$0xff]
        %v1141 = vld [vmem:[%s2 + $0x78] sm:$0xff]
        %v1142 = vld [vmem:[%s3 + $0x68] sm:$0xff]
        %v1143 = vld [vmem:[%s3 + $0x70] sm:$0xff]
        %v1144 = vld [vmem:[%s3 + $0x78] sm:$0xff]
        %v1145 = vld [vmem:[%s3 + $0x80] sm:$0xff]
        %1147 = vset.pattern.permute.xlu0 0
        %1148 = vperm.xlu0 %1147, %v1142
        %v1149 = vpop.permute.xlu0 %1148
        %1152 = vset.pattern.permute.xlu0 0
        %1153 = vperm.xlu0 %1152, %v1143
        %v1154 = vpop.permute.xlu0 %1153
        %1157 = vset.pattern.permute.xlu0 0
        %1158 = vperm.xlu0 %1157, %v1144
        %v1159 = vpop.permute.xlu0 %1158
        %1162 = vset.pattern.permute.xlu0 0
        %1163 = vperm.xlu0 %1162, %v1145
        %v1164 = vpop.permute.xlu0 %1163
        %v1167 = vsel %vm682, %v1138, 0
        %v1170 = vsel %vm682, %v1139, 0
        %v1173 = vsel %vm682, %v1140, 0
        %v1176 = vsel %vm682, %v1141, 0
        %1178 = vmatprep.subr.mxu0 %v1131
        %1179 = vmatpush1.msra.mxu0 %v1130
        %1180 = vmatprep.subr.mxu0 %v1133
        %1181 = vmatpush1.msra.mxu0 %v1132
        %1182 = vmatprep.subr.mxu0 %v1135
        %1183 = vmatpush1.msra.mxu0 %v1134
        %1184 = vmatprep.subr.mxu0 %v1137
        %1185 = vmatpush1.msra.mxu0 %v1136
        %1186 = vmatprep.subr.mxu0 0.0
        %1187 = vmatpush1.msra.mxu0 0.0
        %1188 = vmatprep.subr.mxu0 0.0
        %1189 = vmatpush1.msra.mxu0 0.0
        %1190 = vmatprep.subr.mxu0 0.0
        %1191 = vmatpush1.msra.mxu0 0.0
        %1192 = vmatprep.subr.mxu0 0.0
        %1193 = vmatpush1.msra.mxu0 0.0
        %1194 = vmatprep.subr.mxu0 0.0
        %1195 = vmatpush1.msra.mxu0 0.0
        %1196 = vmatprep.subr.mxu0 0.0
        %1197 = vmatpush1.msra.mxu0 0.0
        %1198 = vmatprep.subr.mxu0 0.0
        %1199 = vmatpush1.msra.mxu0 0.0
        %1200 = vmatprep.subr.mxu0 0.0
        %1201 = vmatpush1.msra.mxu0 0.0
        %1202 = vmatprep.subr.mxu0 0.0
        %1203 = vmatpush1.msra.mxu0 0.0
        %1204 = vmatprep.subr.mxu0 0.0
        %1205 = vmatpush1.msra.mxu0 0.0
        %1206 = vmatprep.subr.mxu0 0.0
        %1207 = vmatpush1.msra.mxu0 0.0
        %1208 = vmatprep.subr.mxu0 0.0
        %1209 = vmatpush1.msra.mxu0 0.0
        %1210 = vmatprep.subr.mxu0 0.0
        %1211 = vmatpush1.msra.mxu0 0.0
        %1212 = vmatprep.subr.mxu0 0.0
        %1213 = vmatpush1.msra.mxu0 0.0
        %1214 = vmatprep.subr.mxu0 0.0
        %1215 = vmatpush1.msra.mxu0 0.0
        %1216 = vmatprep.subr.mxu0 0.0
        %1217 = vmatpush1.msra.mxu0 0.0
        %1218 = vmatprep.subr.mxu0 0.0
        %1219 = vmatpush1.msra.mxu0 0.0
        %1220 = vmatprep.subr.mxu0 0.0
        %1221 = vmatpush1.msra.mxu0 0.0
        %1222 = vmatprep.subr.mxu0 0.0
        %1223 = vmatpush1.msra.mxu0 0.0
        %1224 = vmatprep.subr.mxu0 0.0
        %1225 = vmatpush1.msra.mxu0 0.0
        %1226 = vmatprep.subr.mxu0 0.0
        %1227 = vmatpush1.msra.mxu0 0.0
        %1228 = vmatprep.subr.mxu0 0.0
        %1229 = vmatpush1.msra.mxu0 0.0
        %1230 = vmatprep.subr.mxu0 0.0
        %1231 = vmatpush1.msra.mxu0 0.0
        %1232 = vmatprep.subr.mxu0 0.0
        %1233 = vmatpush1.msra.mxu0 0.0
        %1234 = vmatprep.subr.mxu0 0.0
        %1235 = vmatpush1.msra.mxu0 0.0
        %1236 = vmatprep.subr.mxu0 0.0
        %1237 = vmatpush1.msra.mxu0 0.0
        %1238 = vmatprep.subr.mxu0 0.0
        %1239 = vmatpush1.msra.mxu0 0.0
        %1240 = vmatprep.subr.mxu0 0.0
        %1241 = vmatpush1.msra.mxu0 0.0
        %1242 = vmatprep.mubr.f32.mxu0 0.0
        %1243 = vmatmul.mubr.f32.gmra.mrb[0].mxu0 %v1167
        %v1244 = vpop.f32.mrb[0].mxu0
        %v1245 = vadd.f32 %v1149, %v1244
        %v1246 = vpop.f32.mrb[0].mxu0
        %v1247 = vadd.f32 %v1149, %v1246
        %1248 = vmatprep.mubr.f32.mxu0 0.0
        %1249 = vmatmul.mubr.f32.gmra.mrb[0].mxu0 %v1170
        %v1250 = vpop.f32.mrb[0].mxu0
        %v1251 = vadd.f32 %v1154, %v1250
        %v1252 = vpop.f32.mrb[0].mxu0
        %v1253 = vadd.f32 %v1154, %v1252
        %1254 = vmatprep.mubr.f32.mxu0 0.0
        %1255 = vmatmul.mubr.f32.gmra.mrb[0].mxu0 %v1173
        %v1256 = vpop.f32.mrb[0].mxu0
        %v1257 = vadd.f32 %v1159, %v1256
        %v1258 = vpop.f32.mrb[0].mxu0
        %v1259 = vadd.f32 %v1159, %v1258
        %1260 = vmatprep.mubr.f32.mxu0 0.0
        %1261 = vmatmul.mubr.f32.gmra.mrb[0].mxu0 %v1176
        %v1262 = vpop.f32.mrb[0].mxu0
        %v1263 = vadd.f32 %v1164, %v1262
        %v1264 = vpop.f32.mrb[0].mxu0
        %v1265 = vadd.f32 %v1164, %v1264
        %1266 = vdwg.mxu0
        %v1267 = vmul.f32 %v1245, 0.5
        %v1268 = vmul.f32 %v1247, 0.5
        %v1269 = vmul.f32 %v1251, 0.5
        %v1270 = vmul.f32 %v1253, 0.5
        %v1271 = vmul.f32 %v1257, 0.5
        %v1272 = vmul.f32 %v1259, 0.5
        %v1273 = vmul.f32 %v1263, 0.5
        %v1274 = vmul.f32 %v1265, 0.5
        %v1275 = vtanh.pop %v1267
        %v1276 = vtanh.pop %v1268
        %v1277 = vtanh.pop %v1269
        %v1278 = vtanh.pop %v1270
        %v1279 = vtanh.pop %v1271
        %v1280 = vtanh.pop %v1272
        %v1281 = vtanh.pop %v1273
        %v1282 = vtanh.pop %v1274
        %v1283 = vmul.f32 %v1267, %v1275
        %v1284 = vmul.f32 %v1268, %v1276
        %v1285 = vmul.f32 %v1269, %v1277
        %v1286 = vmul.f32 %v1270, %v1278
        %v1287 = vmul.f32 %v1271, %v1279
        %v1288 = vmul.f32 %v1272, %v1280
        %v1289 = vmul.f32 %v1273, %v1281
        %v1290 = vmul.f32 %v1274, %v1282
        %v1291 = vadd.f32 %v1267, %v1283
        %v1292 = vadd.f32 %v1268, %v1284
        %v1293 = vadd.f32 %v1269, %v1285
        %v1294 = vadd.f32 %v1270, %v1286
        %v1295 = vadd.f32 %v1271, %v1287
        %v1296 = vadd.f32 %v1272, %v1288
        %v1297 = vadd.f32 %v1273, %v1289
        %v1298 = vadd.f32 %v1274, %v1290
        %v1299 = vld [vmem:[%s2 + $0x80] sm:$0xff]
        %v1300 = vld [vmem:[%s2 + $0x88] sm:$0xff]
        %v1301 = vld [vmem:[%s2 + $0x90] sm:$0xff]
        %v1302 = vld [vmem:[%s2 + $0x98] sm:$0xff]
        %v1303 = vld [vmem:[%s3 + $0x88] sm:$0xff]
        %v1304 = vld [vmem:[%s3 + $0x90] sm:$0xff]
        %v1305 = vld [vmem:[%s3 + $0x98] sm:$0xff]
        %v1306 = vld [vmem:[%s3 + $0xa0] sm:$0xff]
        %1308 = vset.pattern.permute.xlu0 0
        %1309 = vperm.xlu0 %1308, %v1303
        %v1310 = vpop.permute.xlu0 %1309
        %1313 = vset.pattern.permute.xlu0 0
        %1314 = vperm.xlu0 %1313, %v1304
        %v1315 = vpop.permute.xlu0 %1314
        %1318 = vset.pattern.permute.xlu0 0
        %1319 = vperm.xlu0 %1318, %v1305
        %v1320 = vpop.permute.xlu0 %1319
        %1323 = vset.pattern.permute.xlu0 0
        %1324 = vperm.xlu0 %1323, %v1306
        %v1325 = vpop.permute.xlu0 %1324
        %v1328 = vsel %vm682, %v1299, 0
        %v1331 = vsel %vm682, %v1300, 0
        %v1334 = vsel %vm682, %v1301, 0
        %v1337 = vsel %vm682, %v1302, 0
        %1339 = vmatprep.subr.mxu0 %v1292
        %1340 = vmatpush1.msra.mxu0 %v1291
        %1341 = vmatprep.subr.mxu0 %v1294
        %1342 = vmatpush1.msra.mxu0 %v1293
        %1343 = vmatprep.subr.mxu0 %v1296
        %1344 = vmatpush1.msra.mxu0 %v1295
        %1345 = vmatprep.subr.mxu0 %v1298
        %1346 = vmatpush1.msra.mxu0 %v1297
        %1347 = vmatprep.subr.mxu0 0.0
        %1348 = vmatpush1.msra.mxu0 0.0
        %1349 = vmatprep.subr.mxu0 0.0
        %1350 = vmatpush1.msra.mxu0 0.0
        %1351 = vmatprep.subr.mxu0 0.0
        %1352 = vmatpush1.msra.mxu0 0.0
        %1353 = vmatprep.subr.mxu0 0.0
        %1354 = vmatpush1.msra.mxu0 0.0
        %1355 = vmatprep.subr.mxu0 0.0
        %1356 = vmatpush1.msra.mxu0 0.0
        %1357 = vmatprep.subr.mxu0 0.0
        %1358 = vmatpush1.msra.mxu0 0.0
        %1359 = vmatprep.subr.mxu0 0.0
        %1360 = vmatpush1.msra.mxu0 0.0
        %1361 = vmatprep.subr.mxu0 0.0
        %1362 = vmatpush1.msra.mxu0 0.0
        %1363 = vmatprep.subr.mxu0 0.0
        %1364 = vmatpush1.msra.mxu0 0.0
        %1365 = vmatprep.subr.mxu0 0.0
        %1366 = vmatpush1.msra.mxu0 0.0
        %1367 = vmatprep.subr.mxu0 0.0
        %1368 = vmatpush1.msra.mxu0 0.0
        %1369 = vmatprep.subr.mxu0 0.0
        %1370 = vmatpush1.msra.mxu0 0.0
        %1371 = vmatprep.subr.mxu0 0.0
        %1372 = vmatpush1.msra.mxu0 0.0
        %1373 = vmatprep.subr.mxu0 0.0
        %1374 = vmatpush1.msra.mxu0 0.0
        %1375 = vmatprep.subr.mxu0 0.0
        %1376 = vmatpush1.msra.mxu0 0.0
        %1377 = vmatprep.subr.mxu0 0.0
        %1378 = vmatpush1.msra.mxu0 0.0
        %1379 = vmatprep.subr.mxu0 0.0
        %1380 = vmatpush1.msra.mxu0 0.0
        %1381 = vmatprep.subr.mxu0 0.0
        %1382 = vmatpush1.msra.mxu0 0.0
        %1383 = vmatprep.subr.mxu0 0.0
        %1384 = vmatpush1.msra.mxu0 0.0
        %1385 = vmatprep.subr.mxu0 0.0
        %1386 = vmatpush1.msra.mxu0 0.0
        %1387 = vmatprep.subr.mxu0 0.0
        %1388 = vmatpush1.msra.mxu0 0.0
        %1389 = vmatprep.subr.mxu0 0.0
        %1390 = vmatpush1.msra.mxu0 0.0
        %1391 = vmatprep.subr.mxu0 0.0
        %1392 = vmatpush1.msra.mxu0 0.0
        %1393 = vmatprep.subr.mxu0 0.0
        %1394 = vmatpush1.msra.mxu0 0.0
        %1395 = vmatprep.subr.mxu0 0.0
        %1396 = vmatpush1.msra.mxu0 0.0
        %1397 = vmatprep.subr.mxu0 0.0
        %1398 = vmatpush1.msra.mxu0 0.0
        %1399 = vmatprep.subr.mxu0 0.0
        %1400 = vmatpush1.msra.mxu0 0.0
        %1401 = vmatprep.subr.mxu0 0.0
        %1402 = vmatpush1.msra.mxu0 0.0
        %1403 = vmatprep.mubr.f32.mxu0 0.0
        %1404 = vmatmul.mubr.f32.gmra.mrb[0].mxu0 %v1328
        %v1405 = vpop.f32.mrb[0].mxu0
        %v1406 = vadd.f32 %v1310, %v1405
        %v1407 = vpop.f32.mrb[0].mxu0
        %v1408 = vadd.f32 %v1310, %v1407
        %1409 = vmatprep.mubr.f32.mxu0 0.0
        %1410 = vmatmul.mubr.f32.gmra.mrb[0].mxu0 %v1331
        %v1411 = vpop.f32.mrb[0].mxu0
        %v1412 = vadd.f32 %v1315, %v1411
        %v1413 = vpop.f32.mrb[0].mxu0
        %v1414 = vadd.f32 %v1315, %v1413
        %1415 = vmatprep.mubr.f32.mxu0 0.0
        %1416 = vmatmul.mubr.f32.gmra.mrb[0].mxu0 %v1334
        %v1417 = vpop.f32.mrb[0].mxu0
        %v1418 = vadd.f32 %v1320, %v1417
        %v1419 = vpop.f32.mrb[0].mxu0
        %v1420 = vadd.f32 %v1320, %v1419
        %1421 = vmatprep.mubr.f32.mxu0 0.0
        %1422 = vmatmul.mubr.f32.gmra.mrb[0].mxu0 %v1337
        %v1423 = vpop.f32.mrb[0].mxu0
        %v1424 = vadd.f32 %v1325, %v1423
        %v1425 = vpop.f32.mrb[0].mxu0
        %v1426 = vadd.f32 %v1325, %v1425
        %1427 = vdwg.mxu0
        %v1428 = vmul.f32 %v1406, 0.5
        %v1429 = vmul.f32 %v1408, 0.5
        %v1430 = vmul.f32 %v1412, 0.5
        %v1431 = vmul.f32 %v1414, 0.5
        %v1432 = vmul.f32 %v1418, 0.5
        %v1433 = vmul.f32 %v1420, 0.5
        %v1434 = vmul.f32 %v1424, 0.5
        %v1435 = vmul.f32 %v1426, 0.5
        %v1436 = vtanh.pop %v1428
        %v1437 = vtanh.pop %v1429
        %v1438 = vtanh.pop %v1430
        %v1439 = vtanh.pop %v1431
        %v1440 = vtanh.pop %v1432
        %v1441 = vtanh.pop %v1433
        %v1442 = vtanh.pop %v1434
        %v1443 = vtanh.pop %v1435
        %v1444 = vmul.f32 %v1428, %v1436
        %v1445 = vmul.f32 %v1429, %v1437
        %v1446 = vmul.f32 %v1430, %v1438
        %v1447 = vmul.f32 %v1431, %v1439
        %v1448 = vmul.f32 %v1432, %v1440
        %v1449 = vmul.f32 %v1433, %v1441
        %v1450 = vmul.f32 %v1434, %v1442
        %v1451 = vmul.f32 %v1435, %v1443
        %v1452 = vadd.f32 %v1428, %v1444
        %v1453 = vadd.f32 %v1429, %v1445
        %v1454 = vadd.f32 %v1430, %v1446
        %v1455 = vadd.f32 %v1431, %v1447
        %v1456 = vadd.f32 %v1432, %v1448
        %v1457 = vadd.f32 %v1433, %v1449
        %v1458 = vadd.f32 %v1434, %v1450
        %v1459 = vadd.f32 %v1435, %v1451
        %v1460 = vld [vmem:[%s2 + $0xa0] sm:$0xff]
        %v1461 = vld [vmem:[%s3 + $0xa8] sm:$0xff]
        %1463 = vset.pattern.permute.xlu0 0
        %1464 = vperm.xlu0 %1463, %v1461
        %v1465 = vpop.permute.xlu0 %1464
        %v1468 = vsel %vm682, %v1460, 0
        %1470 = vmatprep.subr.mxu0 %v1453
        %1471 = vmatpush1.msra.mxu0 %v1452
        %1472 = vmatprep.subr.mxu0 %v1455
        %1473 = vmatpush1.msra.mxu0 %v1454
        %1474 = vmatprep.subr.mxu0 %v1457
        %1475 = vmatpush1.msra.mxu0 %v1456
        %1476 = vmatprep.subr.mxu0 %v1459
        %1477 = vmatpush1.msra.mxu0 %v1458
        %1478 = vmatprep.subr.mxu0 0.0
        %1479 = vmatpush1.msra.mxu0 0.0
        %1480 = vmatprep.subr.mxu0 0.0
        %1481 = vmatpush1.msra.mxu0 0.0
        %1482 = vmatprep.subr.mxu0 0.0
        %1483 = vmatpush1.msra.mxu0 0.0
        %1484 = vmatprep.subr.mxu0 0.0
        %1485 = vmatpush1.msra.mxu0 0.0
        %1486 = vmatprep.subr.mxu0 0.0
        %1487 = vmatpush1.msra.mxu0 0.0
        %1488 = vmatprep.subr.mxu0 0.0
        %1489 = vmatpush1.msra.mxu0 0.0
        %1490 = vmatprep.subr.mxu0 0.0
        %1491 = vmatpush1.msra.mxu0 0.0
        %1492 = vmatprep.subr.mxu0 0.0
        %1493 = vmatpush1.msra.mxu0 0.0
        %1494 = vmatprep.subr.mxu0 0.0
        %1495 = vmatpush1.msra.mxu0 0.0
        %1496 = vmatprep.subr.mxu0 0.0
        %1497 = vmatpush1.msra.mxu0 0.0
        %1498 = vmatprep.subr.mxu0 0.0
        %1499 = vmatpush1.msra.mxu0 0.0
        %1500 = vmatprep.subr.mxu0 0.0
        %1501 = vmatpush1.msra.mxu0 0.0
        %1502 = vmatprep.subr.mxu0 0.0
        %1503 = vmatpush1.msra.mxu0 0.0
        %1504 = vmatprep.subr.mxu0 0.0
        %1505 = vmatpush1.msra.mxu0 0.0
        %1506 = vmatprep.subr.mxu0 0.0
        %1507 = vmatpush1.msra.mxu0 0.0
        %1508 = vmatprep.subr.mxu0 0.0
        %1509 = vmatpush1.msra.mxu0 0.0
        %1510 = vmatprep.subr.mxu0 0.0
        %1511 = vmatpush1.msra.mxu0 0.0
        %1512 = vmatprep.subr.mxu0 0.0
        %1513 = vmatpush1.msra.mxu0 0.0
        %1514 = vmatprep.subr.mxu0 0.0
        %1515 = vmatpush1.msra.mxu0 0.0
        %1516 = vmatprep.subr.mxu0 0.0
        %1517 = vmatpush1.msra.mxu0 0.0
        %1518 = vmatprep.subr.mxu0 0.0
        %1519 = vmatpush1.msra.mxu0 0.0
        %1520 = vmatprep.subr.mxu0 0.0
        %1521 = vmatpush1.msra.mxu0 0.0
        %1522 = vmatprep.subr.mxu0 0.0
        %1523 = vmatpush1.msra.mxu0 0.0
        %1524 = vmatprep.subr.mxu0 0.0
        %1525 = vmatpush1.msra.mxu0 0.0
        %1526 = vmatprep.subr.mxu0 0.0
        %1527 = vmatpush1.msra.mxu0 0.0
        %1528 = vmatprep.subr.mxu0 0.0
        %1529 = vmatpush1.msra.mxu0 0.0
        %1530 = vmatprep.subr.mxu0 0.0
        %1531 = vmatpush1.msra.mxu0 0.0
        %1532 = vmatprep.subr.mxu0 0.0
        %1533 = vmatpush1.msra.mxu0 0.0
        %1534 = vmatprep.mubr.f32.mxu0 0.0
        %1535 = vmatmul.mubr.f32.gmra.mrb[0].mxu0 %v1468
        %v1536 = vpop.f32.mrb[0].mxu0
        %v1537 = vadd.f32 %v1465, %v1536
        %v1538 = vpop.f32.mrb[0].mxu0
        %v1539 = vadd.f32 %v1465, %v1538
        %1540 = vdwg.mxu0
        %1541 = vst [vmem:[%s205] sm:$0xff] %v1537
        %1542 = vst [vmem:[%s205 + $0x8] sm:$0xff] %v1539
        %s1543 = sand.u32 %s120, 1
        %s1544 = scalar_lea.sflag [#allocation3], %s1543
        %s1545 = sand.u32 %s120, 1
        %s1546 = smul.addr %s1545, 16
        %s1547 = scalar_lea.vmem [#allocation2], %s1546
        // Predicated region
        $region37: #{tpu_custom_call.1} parent=35 // pred_check
          %p1548 = pneg %p130
        $region38: #{tpu_custom_call.1} parent=35 // pred_check_branch
          %1550 = sbr.rel (%p1548) target = $region40
        $region39: #{tpu_custom_call.1} parent=35 // pred_region
          %s1551 = smul.u32 2, %s18
          %s1553 = ssub.s32 256, 256
          %1554 = vsyncadd %s1544, %s1553
          %s1555 = smul.addr %s1551, 128
          %s1556 = scalar_lea.hbm %s4, %s1555
          %s1558 = sshll.u32 %s1547, 4
          %s1559 = int_to_ptr.vmem [resolvable:$true] %s1558
          %1561 = dma.vmem_to_hbm [thread:$0]  %s1559, 256, %s1556, %s1544
        $region40: #{tpu_custom_call.1} parent=35 // pred_fallthru
          _
      $region36: #{tpu_custom_call.1} parent=5 // pred_fallthru
        _
      %p1562 = scmp.le.s32.totalorder 2, %s13
      // Predicated region
      $region41: #{tpu_custom_call.1} parent=5 // pred_check
        %p1563 = pneg %p1562
      $region42: #{tpu_custom_call.1} parent=5 // pred_check_branch
        %1565 = sbr.rel (%p1563) target = $region44
      $region43: #{tpu_custom_call.1} parent=5 // pred_region
        %s1566 = ssub.s32 %s13, 2
        // Predicated region
        $region45: #{tpu_custom_call.1} parent=43 // pred_check
          %p1567 = pneg %p136
        $region46: #{tpu_custom_call.1} parent=43 // pred_check_branch
          %1569 = sbr.rel (%p1567) target = $region48
        $region47: #{tpu_custom_call.1} parent=43 // pred_region
          %s1570 = sand.u32 %s121, 1
          %s1571 = scalar_lea.sflag [#allocation3], %s1570
          %s1572 = sand.u32 %s121, 1
          %s1573 = smul.addr %s1572, 16
          %s1574 = scalar_lea.vmem [#allocation2], %s1573
          %1575 = dma.done %s1571, 256
        $region48: #{tpu_custom_call.1} parent=43 // pred_fallthru
          _
      $region44: #{tpu_custom_call.1} parent=5 // pred_fallthru
        _
    $region6: #{tpu_custom_call.1} parent=1 // loop_footer
      %s17 = sadd.s32 1, %s13
    $region7: #{tpu_custom_call.1} parent=1 // loop_footer_branch
      %12 = sbr.rel target = $region3
    $region8: #{tpu_custom_call.1} parent=1 // loop_exit
      _
    %1576 = vsyncpa [#allocation3], 1
    %s1577 = scalar_lea.sflag [#allocation3], 1
    %1578 = vsyncpa %s1577, 1

</llo_original>
